<compile_context>
chip_gen: v7x
topology: tpu7x:2x2x1
jax: 0.10.0
libtpu: 0.0.40
codegen_flags: <defaults>
</compile_context>

<pallas_src>
import jax
import jax.numpy as jnp
from jax.experimental import pallas as pl
from jax.experimental.pallas import tpu as pltpu

# ReLU after branch hidden layers (0..2) and multihead hidden layers (4..6);
# layer 3 is the branch output (feeds the multihead), layer 7 ends in sigmoid.
_RELU = (True, True, True, False, True, True, True, False)


# ----------------------------- kernel ---------------------------------------

def feedforward_kernel(x_ref, w0, w1, w2, w3, w4, w5, w6, w7, b_ref, out_ref):
    """x_ref: (D_IN, B_TILE) bf16 (batch on lanes); w_j: (out_j, in_j) bf16;
    b_ref: (max_out, 8) f32 bias slab (column j = layer j bias);
    out_ref: (1, B_TILE) f32 lane-dense scores."""
    w_refs = (w0, w1, w2, w3, w4, w5, w6, w7)
    h = x_ref[...]                                       # bf16
    for j, w_ref in enumerate(w_refs):
        width = w_ref.shape[0]                           # static Python int
        y = jnp.dot(w_ref[...], h, preferred_element_type=jnp.float32)
        y = y + b_ref[0:width, j:j + 1]                  # f32 bias, lane-broadcast
        if _RELU[j]:
            y = jnp.maximum(y, 0.0)
        if j + 1 < len(w_refs):
            h = y.astype(jnp.bfloat16)                   # bf16 for next MXU pass
    # y is (1, B_TILE): sigmoid in f32, unmasked lane-dense store.
    out_ref[...] = 1.0 / (1.0 + jnp.exp(-y))


# ----------------------------- param packing --------------------------------

def _block_diag(blocks):
    rows = sum(b.shape[0] for b in blocks)
    cols = sum(b.shape[1] for b in blocks)
    out = jnp.zeros((rows, cols), jnp.float32)
    r = c = 0
    for blk in blocks:
        out = out.at[r:r + blk.shape[0], c:c + blk.shape[1]].set(blk)
        r += blk.shape[0]
        c += blk.shape[1]
    return out


def pack_params(params):
    """params: flat [W, b] * 16 in order FF_meds(4), FF_dx(4), FF_physio(4),
    FF_multihead(4); W in PyTorch layout (out, in), b shape (out,).

    Returns 8 bf16 weight slabs (branch depths fused block-diagonally, matching
    torch.cat((meds, dx, physio), dim=1) ordering) and one f32 bias slab of
    shape (max_out, 8) whose column j holds layer j's bias (zero-padded)."""
    W = [params[2 * i] for i in range(16)]
    b = [params[2 * i + 1] for i in range(16)]
    ws = [_block_diag([W[d], W[4 + d], W[8 + d]]) for d in range(4)] + W[12:16]
    bs = [jnp.concatenate([b[d], b[4 + d], b[8 + d]]) for d in range(4)] + b[12:16]
    max_out = max(int(w.shape[0]) for w in ws)
    bias_slab = jnp.zeros((max_out, len(bs)), jnp.float32)
    for j, bj in enumerate(bs):
        bias_slab = bias_slab.at[: bj.shape[0], j].set(bj)
    return [w.astype(jnp.bfloat16) for w in ws], bias_slab


# ----------------------------- wrapper ---------------------------------------

def feedforward(x_drugs, x_dx, x_physio, params, *, b_tile=128):
    """Forward pass. Returns (B, 1) f32 scores in (0, 1).

    b_tile: batch rows per grid step (lane-aligned). 128 is plenty here; use
    512-1024 for large batches — activation tiles stay tiny either way."""
    assert b_tile % 128 == 0, "batch tile must be lane-aligned (multiple of 128)"
    B = x_drugs.shape[0]
    ws, bias_slab = pack_params(params)

    # Concatenate inputs once (the block-diagonal weights consume the fused
    # feature axis), pad batch to the tile size, and go feature-major so the
    # batch sits on the lane dimension inside the kernel.
    x_cat = jnp.concatenate([x_drugs, x_dx, x_physio], axis=1)      # (B, D_IN)
    d_in = x_cat.shape[1]
    num_tiles = pl.cdiv(B, b_tile)
    padded_b = num_tiles * b_tile
    if padded_b != B:
        x_cat = jnp.pad(x_cat, ((0, padded_b - B), (0, 0)))
    x_t = x_cat.T.astype(jnp.bfloat16)                              # (D_IN, padded_b)

    in_specs = [pl.BlockSpec((d_in, b_tile), lambda i: (0, i))]     # batch-tiled
    in_specs += [pl.BlockSpec(w.shape, lambda i: (0, 0)) for w in ws]   # resident
    in_specs += [pl.BlockSpec(bias_slab.shape, lambda i: (0, 0))]       # resident

    out = pl.pallas_call(
        feedforward_kernel,
        out_shape=jax.ShapeDtypeStruct((1, padded_b), jnp.float32),
        grid=(num_tiles,),
        in_specs=in_specs,
        out_specs=pl.BlockSpec((1, b_tile), lambda i: (0, i)),      # lane-dense
        compiler_params=pltpu.CompilerParams(
            dimension_semantics=("parallel",)),                     # v7x megacore
    )(x_t, *ws, bias_slab)

    return out[:, :B].T                                             # (B, 1)


# ----------------------------- params / reference ----------------------------

def init_linear(key, fan_in, fan_out):
    """PyTorch-default uniform(-1/sqrt(fan_in), 1/sqrt(fan_in)); W is (out, in)."""
    kw, kb = jax.random.split(key)
    bound = 1.0 / float(fan_in) ** 0.5
    w = jax.random.uniform(kw, (fan_out, fan_in), jnp.float32, -bound, bound)
    b = jax.random.uniform(kb, (fan_out,), jnp.float32, -bound, bound)
    return w, b


def make_params(key, d_drugs, d_dx, d_physio):
    branch_dims = [
        [(d_drugs, 100), (100, 50), (50, 10), (10, 5)],    # FF_meds
        [(d_dx, 100), (100, 50), (50, 10), (10, 5)],       # FF_dx
        [(d_physio, 40), (40, 20), (20, 10), (10, 5)],     # FF_physio
        [(15, 15), (15, 10), (10, 5), (5, 1)],             # FF_multihead
    ]
    params = []
    for dims in branch_dims:
        for fi, fo in dims:
            key, sub = jax.random.split(key)
            w, b = init_linear(sub, fi, fo)
            params += [w, b]
    return params


def reference(x_drugs, x_dx, x_physio, params, matmul_dtype=jnp.float32):
    """Pure-JAX reference mirroring the PyTorch forward pass.  With
    matmul_dtype=bfloat16 it mirrors the kernel's bf16-in / f32-acc matmuls."""
    def pairs(flat):
        return [(flat[2 * i], flat[2 * i + 1]) for i in range(len(flat) // 2)]

    def dot(x, w):
        return jnp.dot(x.astype(matmul_dtype), w.T.astype(matmul_dtype),
                       preferred_element_type=jnp.float32)

    def mlp(x, layers, final_act=None):
        n = len(layers)
        for idx, (w, b) in enumerate(layers):
            x = dot(x, w) + b
            if idx < n - 1:
                x = jnp.maximum(x, 0.0)
        if final_act == "sigmoid":
            x = jax.nn.sigmoid(x)
        return x

    meds = mlp(x_drugs, pairs(params[0:8]))
    dx = mlp(x_dx, pairs(params[8:16]))
    physio = mlp(x_physio, pairs(params[16:24]))
    x_cat = jnp.concatenate([meds, dx, physio], axis=1)
    return mlp(x_cat, pairs(params[24:32]), final_act="sigmoid")


# ----------------------------- main -------------------------------------------

if __name__ == "__main__":
    key = jax.random.PRNGKey(0)
    # Small problem; B=200 exercises batch padding and a 2-step parallel grid.
    B, D_DRUGS, D_DX, D_PHYSIO = 200, 32, 16, 8

    k_params, k_d, k_x, k_p = jax.random.split(key, 4)
    params = make_params(k_params, D_DRUGS, D_DX, D_PHYSIO)

    x_drugs = jax.random.normal(k_d, (B, D_DRUGS), jnp.float32)
    x_dx = jax.random.normal(k_x, (B, D_DX), jnp.float32)
    x_physio = jax.random.normal(k_p, (B, D_PHYSIO), jnp.float32)

    out = feedforward(x_drugs, x_dx, x_physio, params)
    out = jax.block_until_ready(out)
    assert out.shape == (B, 1)

    # Tight check vs a reference with the same bf16-in / f32-acc matmuls.
    ref_bf16 = reference(x_drugs, x_dx, x_physio, params, matmul_dtype=jnp.bfloat16)
    assert jnp.allclose(out, ref_bf16, rtol=1e-3, atol=1e-3), "mismatch vs bf16 reference"

    # Looser check vs the exact f32 PyTorch-equivalent forward (bf16 matmul error).
    ref_f32 = reference(x_drugs, x_dx, x_physio, params, matmul_dtype=jnp.float32)
    assert jnp.allclose(out, ref_f32, rtol=2e-2, atol=2e-2), "mismatch vs f32 reference"

    print("KERNEL_OK")
</pallas_src>

<mosaic_0001>
module attributes {stable_mosaic.version = 11 : i64} {
  func.func @feedforward_kernel(%arg0: i32, %arg1: memref<56x128xbf16, #tpu.memory_space<vmem>>, %arg2: memref<240x56xbf16, #tpu.memory_space<vmem>>, %arg3: memref<120x240xbf16, #tpu.memory_space<vmem>>, %arg4: memref<30x120xbf16, #tpu.memory_space<vmem>>, %arg5: memref<15x30xbf16, #tpu.memory_space<vmem>>, %arg6: memref<15x15xbf16, #tpu.memory_space<vmem>>, %arg7: memref<10x15xbf16, #tpu.memory_space<vmem>>, %arg8: memref<5x10xbf16, #tpu.memory_space<vmem>>, %arg9: memref<1x5xbf16, #tpu.memory_space<vmem>>, %arg10: memref<240x8xf32, #tpu.memory_space<vmem>>, %arg11: memref<1x128xf32, #tpu.memory_space<vmem>>) attributes {dimension_semantics = [#tpu.dimension_semantics<parallel>], iteration_bounds = array<i64: 2>, scalar_prefetch = 0 : i64, scratch_operands = 0 : i64, tpu.core_type = #tpu.core_type<tc>, window_params = [{transform_indices = @transform_0, window_bounds = array<i64: 56, 128>}, {pipeline_mode = #tpu.pipeline_mode<synchronous>, transform_indices = @transform_1, window_bounds = array<i64: 240, 56>}, {pipeline_mode = #tpu.pipeline_mode<synchronous>, transform_indices = @transform_2, window_bounds = array<i64: 120, 240>}, {pipeline_mode = #tpu.pipeline_mode<synchronous>, transform_indices = @transform_3, window_bounds = array<i64: 30, 120>}, {pipeline_mode = #tpu.pipeline_mode<synchronous>, transform_indices = @transform_4, window_bounds = array<i64: 15, 30>}, {pipeline_mode = #tpu.pipeline_mode<synchronous>, transform_indices = @transform_5, window_bounds = array<i64: 15, 15>}, {pipeline_mode = #tpu.pipeline_mode<synchronous>, transform_indices = @transform_6, window_bounds = array<i64: 10, 15>}, {pipeline_mode = #tpu.pipeline_mode<synchronous>, transform_indices = @transform_7, window_bounds = array<i64: 5, 10>}, {pipeline_mode = #tpu.pipeline_mode<synchronous>, transform_indices = @transform_8, window_bounds = array<i64: 1, 5>}, {pipeline_mode = #tpu.pipeline_mode<synchronous>, transform_indices = @transform_9, window_bounds = array<i64: 240, 8>}, {transform_indices = @transform_10, window_bounds = array<i64: 1, 128>}]} {
    %c0 = arith.constant 0 : index
    %c0_0 = arith.constant 0 : index
    %0 = vector.load %arg1[%c0, %c0_0] : memref<56x128xbf16, #tpu.memory_space<vmem>>, vector<56x128xbf16>
    %c0_1 = arith.constant 0 : index
    %c0_2 = arith.constant 0 : index
    %1 = vector.load %arg2[%c0_1, %c0_2] : memref<240x56xbf16, #tpu.memory_space<vmem>>, vector<240x56xbf16>
    %cst = arith.constant dense<0.000000e+00> : vector<240x128xf32>
    %2 = tpu.matmul %1, %0, %cst {dimension_numbers = #tpu.dot_dimension_numbers<[1], [0], [0], [1], [0, 0, 1, 1], [], []>} : vector<240x56xbf16>, vector<56x128xbf16>, vector<240x128xf32> -> vector<240x128xf32>
    %c0_3 = arith.constant 0 : index
    %c0_4 = arith.constant 0 : index
    %3 = vector.load %arg10[%c0_3, %c0_4] : memref<240x8xf32, #tpu.memory_space<vmem>>, vector<240x1xf32>
    %4 = vector.broadcast %3 : vector<240x1xf32> to vector<240x128xf32>
    %5 = arith.addf %2, %4 : vector<240x128xf32>
    %cst_5 = arith.constant 0.000000e+00 : f32
    %6 = vector.broadcast %cst_5 : f32 to vector<240x128xf32>
    %7 = arith.maximumf %5, %6 : vector<240x128xf32>
    %8 = arith.truncf %7 : vector<240x128xf32> to vector<240x128xbf16>
    %c0_6 = arith.constant 0 : index
    %c0_7 = arith.constant 0 : index
    %9 = vector.load %arg3[%c0_6, %c0_7] : memref<120x240xbf16, #tpu.memory_space<vmem>>, vector<120x240xbf16>
    %cst_8 = arith.constant dense<0.000000e+00> : vector<120x128xf32>
    %10 = tpu.matmul %9, %8, %cst_8 {dimension_numbers = #tpu.dot_dimension_numbers<[1], [0], [0], [1], [0, 0, 1, 1], [], []>} : vector<120x240xbf16>, vector<240x128xbf16>, vector<120x128xf32> -> vector<120x128xf32>
    %c0_9 = arith.constant 0 : index
    %c1 = arith.constant 1 : index
    %11 = vector.load %arg10[%c0_9, %c1] : memref<240x8xf32, #tpu.memory_space<vmem>>, vector<120x1xf32>
    %12 = vector.broadcast %11 : vector<120x1xf32> to vector<120x128xf32>
    %13 = arith.addf %10, %12 : vector<120x128xf32>
    %cst_10 = arith.constant 0.000000e+00 : f32
    %14 = vector.broadcast %cst_10 : f32 to vector<120x128xf32>
    %15 = arith.maximumf %13, %14 : vector<120x128xf32>
    %16 = arith.truncf %15 : vector<120x128xf32> to vector<120x128xbf16>
    %c0_11 = arith.constant 0 : index
    %c0_12 = arith.constant 0 : index
    %17 = vector.load %arg4[%c0_11, %c0_12] : memref<30x120xbf16, #tpu.memory_space<vmem>>, vector<30x120xbf16>
    %cst_13 = arith.constant dense<0.000000e+00> : vector<30x128xf32>
    %18 = tpu.matmul %17, %16, %cst_13 {dimension_numbers = #tpu.dot_dimension_numbers<[1], [0], [0], [1], [0, 0, 1, 1], [], []>} : vector<30x120xbf16>, vector<120x128xbf16>, vector<30x128xf32> -> vector<30x128xf32>
    %c0_14 = arith.constant 0 : index
    %c2 = arith.constant 2 : index
    %19 = vector.load %arg10[%c0_14, %c2] : memref<240x8xf32, #tpu.memory_space<vmem>>, vector<30x1xf32>
    %20 = vector.broadcast %19 : vector<30x1xf32> to vector<30x128xf32>
    %21 = arith.addf %18, %20 : vector<30x128xf32>
    %cst_15 = arith.constant 0.000000e+00 : f32
    %22 = vector.broadcast %cst_15 : f32 to vector<30x128xf32>
    %23 = arith.maximumf %21, %22 : vector<30x128xf32>
    %24 = arith.truncf %23 : vector<30x128xf32> to vector<30x128xbf16>
    %c0_16 = arith.constant 0 : index
    %c0_17 = arith.constant 0 : index
    %25 = vector.load %arg5[%c0_16, %c0_17] : memref<15x30xbf16, #tpu.memory_space<vmem>>, vector<15x30xbf16>
    %cst_18 = arith.constant dense<0.000000e+00> : vector<15x128xf32>
    %26 = tpu.matmul %25, %24, %cst_18 {dimension_numbers = #tpu.dot_dimension_numbers<[1], [0], [0], [1], [0, 0, 1, 1], [], []>} : vector<15x30xbf16>, vector<30x128xbf16>, vector<15x128xf32> -> vector<15x128xf32>
    %c0_19 = arith.constant 0 : index
    %c3 = arith.constant 3 : index
    %27 = vector.load %arg10[%c0_19, %c3] : memref<240x8xf32, #tpu.memory_space<vmem>>, vector<15x1xf32>
    %28 = vector.broadcast %27 : vector<15x1xf32> to vector<15x128xf32>
    %29 = arith.addf %26, %28 : vector<15x128xf32>
    %30 = arith.truncf %29 : vector<15x128xf32> to vector<15x128xbf16>
    %c0_20 = arith.constant 0 : index
    %c0_21 = arith.constant 0 : index
    %31 = vector.load %arg6[%c0_20, %c0_21] : memref<15x15xbf16, #tpu.memory_space<vmem>>, vector<15x15xbf16>
    %cst_22 = arith.constant dense<0.000000e+00> : vector<15x128xf32>
    %32 = tpu.matmul %31, %30, %cst_22 {dimension_numbers = #tpu.dot_dimension_numbers<[1], [0], [0], [1], [0, 0, 1, 1], [], []>} : vector<15x15xbf16>, vector<15x128xbf16>, vector<15x128xf32> -> vector<15x128xf32>
    %c0_23 = arith.constant 0 : index
    %c4 = arith.constant 4 : index
    %33 = vector.load %arg10[%c0_23, %c4] : memref<240x8xf32, #tpu.memory_space<vmem>>, vector<15x1xf32>
    %34 = vector.broadcast %33 : vector<15x1xf32> to vector<15x128xf32>
    %35 = arith.addf %32, %34 : vector<15x128xf32>
    %cst_24 = arith.constant 0.000000e+00 : f32
    %36 = vector.broadcast %cst_24 : f32 to vector<15x128xf32>
    %37 = arith.maximumf %35, %36 : vector<15x128xf32>
    %38 = arith.truncf %37 : vector<15x128xf32> to vector<15x128xbf16>
    %c0_25 = arith.constant 0 : index
    %c0_26 = arith.constant 0 : index
    %39 = vector.load %arg7[%c0_25, %c0_26] : memref<10x15xbf16, #tpu.memory_space<vmem>>, vector<10x15xbf16>
    %cst_27 = arith.constant dense<0.000000e+00> : vector<10x128xf32>
    %40 = tpu.matmul %39, %38, %cst_27 {dimension_numbers = #tpu.dot_dimension_numbers<[1], [0], [0], [1], [0, 0, 1, 1], [], []>} : vector<10x15xbf16>, vector<15x128xbf16>, vector<10x128xf32> -> vector<10x128xf32>
    %c0_28 = arith.constant 0 : index
    %c5 = arith.constant 5 : index
    %41 = vector.load %arg10[%c0_28, %c5] : memref<240x8xf32, #tpu.memory_space<vmem>>, vector<10x1xf32>
    %42 = vector.broadcast %41 : vector<10x1xf32> to vector<10x128xf32>
    %43 = arith.addf %40, %42 : vector<10x128xf32>
    %cst_29 = arith.constant 0.000000e+00 : f32
    %44 = vector.broadcast %cst_29 : f32 to vector<10x128xf32>
    %45 = arith.maximumf %43, %44 : vector<10x128xf32>
    %46 = arith.truncf %45 : vector<10x128xf32> to vector<10x128xbf16>
    %c0_30 = arith.constant 0 : index
    %c0_31 = arith.constant 0 : index
    %47 = vector.load %arg8[%c0_30, %c0_31] : memref<5x10xbf16, #tpu.memory_space<vmem>>, vector<5x10xbf16>
    %cst_32 = arith.constant dense<0.000000e+00> : vector<5x128xf32>
    %48 = tpu.matmul %47, %46, %cst_32 {dimension_numbers = #tpu.dot_dimension_numbers<[1], [0], [0], [1], [0, 0, 1, 1], [], []>} : vector<5x10xbf16>, vector<10x128xbf16>, vector<5x128xf32> -> vector<5x128xf32>
    %c0_33 = arith.constant 0 : index
    %c6 = arith.constant 6 : index
    %49 = vector.load %arg10[%c0_33, %c6] : memref<240x8xf32, #tpu.memory_space<vmem>>, vector<5x1xf32>
    %50 = vector.broadcast %49 : vector<5x1xf32> to vector<5x128xf32>
    %51 = arith.addf %48, %50 : vector<5x128xf32>
    %cst_34 = arith.constant 0.000000e+00 : f32
    %52 = vector.broadcast %cst_34 : f32 to vector<5x128xf32>
    %53 = arith.maximumf %51, %52 : vector<5x128xf32>
    %54 = arith.truncf %53 : vector<5x128xf32> to vector<5x128xbf16>
    %c0_35 = arith.constant 0 : index
    %c0_36 = arith.constant 0 : index
    %55 = vector.load %arg9[%c0_35, %c0_36] : memref<1x5xbf16, #tpu.memory_space<vmem>>, vector<1x5xbf16>
    %cst_37 = arith.constant dense<0.000000e+00> : vector<1x128xf32>
    %56 = tpu.matmul %55, %54, %cst_37 {dimension_numbers = #tpu.dot_dimension_numbers<[1], [0], [0], [1], [0, 0, 1, 1], [], []>} : vector<1x5xbf16>, vector<5x128xbf16>, vector<1x128xf32> -> vector<1x128xf32>
    %c0_38 = arith.constant 0 : index
    %c7 = arith.constant 7 : index
    %57 = vector.load %arg10[%c0_38, %c7] : memref<240x8xf32, #tpu.memory_space<vmem>>, vector<1x1xf32>
    %58 = vector.broadcast %57 : vector<1x1xf32> to vector<1x128xf32>
    %59 = arith.addf %56, %58 : vector<1x128xf32>
    %cst_39 = arith.constant 0.000000e+00 : f32
    %60 = vector.broadcast %cst_39 : f32 to vector<1x128xf32>
    %61 = arith.subf %60, %59 : vector<1x128xf32>
    %62 = math.exp %61 : vector<1x128xf32>
    %cst_40 = arith.constant 1.000000e+00 : f32
    %63 = vector.broadcast %cst_40 : f32 to vector<1x128xf32>
    %64 = arith.addf %63, %62 : vector<1x128xf32>
    %cst_41 = arith.constant 1.000000e+00 : f32
    %65 = vector.broadcast %cst_41 : f32 to vector<1x128xf32>
    %66 = arith.divf %65, %64 : vector<1x128xf32>
    %c0_42 = arith.constant 0 : index
    %c0_43 = arith.constant 0 : index
    %67 = vector.load %arg11[%c0_42, %c0_43] : memref<1x128xf32, #tpu.memory_space<vmem>>, vector<1x128xf32>
    tpu.vector_store %arg11[%c0_42, %c0_43], %66 {strides = array<i32>} : memref<1x128xf32, #tpu.memory_space<vmem>>, vector<1x128xf32>,
    return
  }
  func.func @transform_0(%arg0: i32) -> (i32, i32) {
    %c0_i32 = arith.constant 0 : i32
    %c0_i32_0 = arith.constant 0 : i32
    return %c0_i32, %arg0 : i32, i32
  }
  func.func @transform_1(%arg0: i32) -> (i32, i32) {
    %c0_i32 = arith.constant 0 : i32
    %c0_i32_0 = arith.constant 0 : i32
    %c0_i32_1 = arith.constant 0 : i32
    return %c0_i32, %c0_i32_0 : i32, i32
  }
  func.func @transform_2(%arg0: i32) -> (i32, i32) {
    %c0_i32 = arith.constant 0 : i32
    %c0_i32_0 = arith.constant 0 : i32
    %c0_i32_1 = arith.constant 0 : i32
    return %c0_i32, %c0_i32_0 : i32, i32
  }
  func.func @transform_3(%arg0: i32) -> (i32, i32) {
    %c0_i32 = arith.constant 0 : i32
    %c0_i32_0 = arith.constant 0 : i32
    %c0_i32_1 = arith.constant 0 : i32
    return %c0_i32, %c0_i32_0 : i32, i32
  }
  func.func @transform_4(%arg0: i32) -> (i32, i32) {
    %c0_i32 = arith.constant 0 : i32
    %c0_i32_0 = arith.constant 0 : i32
    %c0_i32_1 = arith.constant 0 : i32
    return %c0_i32, %c0_i32_0 : i32, i32
  }
  func.func @transform_5(%arg0: i32) -> (i32, i32) {
    %c0_i32 = arith.constant 0 : i32
    %c0_i32_0 = arith.constant 0 : i32
    %c0_i32_1 = arith.constant 0 : i32
    return %c0_i32, %c0_i32_0 : i32, i32
  }
  func.func @transform_6(%arg0: i32) -> (i32, i32) {
    %c0_i32 = arith.constant 0 : i32
    %c0_i32_0 = arith.constant 0 : i32
    %c0_i32_1 = arith.constant 0 : i32
    return %c0_i32, %c0_i32_0 : i32, i32
  }
  func.func @transform_7(%arg0: i32) -> (i32, i32) {
    %c0_i32 = arith.constant 0 : i32
    %c0_i32_0 = arith.constant 0 : i32
    %c0_i32_1 = arith.constant 0 : i32
    return %c0_i32, %c0_i32_0 : i32, i32
  }
  func.func @transform_8(%arg0: i32) -> (i32, i32) {
    %c0_i32 = arith.constant 0 : i32
    %c0_i32_0 = arith.constant 0 : i32
    %c0_i32_1 = arith.constant 0 : i32
    return %c0_i32, %c0_i32_0 : i32, i32
  }
  func.func @transform_9(%arg0: i32) -> (i32, i32) {
    %c0_i32 = arith.constant 0 : i32
    %c0_i32_0 = arith.constant 0 : i32
    %c0_i32_1 = arith.constant 0 : i32
    return %c0_i32, %c0_i32_0 : i32, i32
  }
  func.func @transform_10(%arg0: i32) -> (i32, i32) {
    %c0_i32 = arith.constant 0 : i32
    %c0_i32_0 = arith.constant 0 : i32
    return %c0_i32, %arg0 : i32, i32
  }
}

</mosaic_0001>

<llo_original>
// kernel: tpu_custom_call.1
$region0: #{tpu_custom_call.1}
  #allocation0 [shape = 'u32[]', space=smem, size = 0x4, offset = 0x4, fixed_abs, tag = 'smem constant byte address 0x4 - core index']
  #allocation1 [shape = 'u32[144,128]{1,0:T(1,128)}', space=vmem, size = 0x12000, scoped, tag = 'internal scratch']
  %s0 = inlined_call_operand.vmem [shape: bf16[56,256], index: 0, kind: input, shape index: {}]
  %s1 = inlined_call_operand.vmem [shape: bf16[240,56], index: 1, kind: input, shape index: {}]
  %s2 = inlined_call_operand.vmem [shape: bf16[120,240], index: 2, kind: input, shape index: {}]
  %s3 = inlined_call_operand.vmem [shape: bf16[30,120], index: 3, kind: input, shape index: {}]
  %s4 = inlined_call_operand.vmem [shape: bf16[15,30], index: 4, kind: input, shape index: {}]
  %s5 = inlined_call_operand.vmem [shape: bf16[15,15], index: 5, kind: input, shape index: {}]
  %s6 = inlined_call_operand.vmem [shape: bf16[10,15], index: 6, kind: input, shape index: {}]
  %s7 = inlined_call_operand.vmem [shape: bf16[5,10], index: 7, kind: input, shape index: {}]
  %s8 = inlined_call_operand.vmem [shape: bf16[1,5], index: 8, kind: input, shape index: {}]
  %s9 = inlined_call_operand.vmem [shape: f32[240,8], index: 9, kind: input, shape index: {}]
  %s10 = inlined_call_operand.hbm [shape: f32[1,256], index: 10, kind: output, shape index: {}]
  %s11 = sld [smem:[#allocation0]]
  $region114: #{tpu_custom_call.1} parent=0
    _
  %s13 = ssub.s32 1, %s11
  %s14 = scalar_select 0, %s13, %s11
  $region1: #{tpu_custom_call.1} parent=0
    #allocation2 [shape = 'u8[28672]{0}', space=vmem, size = 0x7000, scoped, tag = 'input window, operand 0']
    #allocation3 [shape = 'u8[1024]{0}', space=vmem, size = 0x400, scoped, tag = 'output window, operand 0']
    #allocation4 [shape = 's32[2]{0}', space=sflag, size = 0x8, scoped, tag = 'scoped memory for tpu_custom_call.1']
    %15 = vsyncpa [#allocation4], 0
    %s16 = scalar_lea.sflag [#allocation4], 1
    %17 = vsyncpa %s16, 0
    loop: start=0, step=1, limit=4
    $region2: #{tpu_custom_call.1} parent=1 // loop_pre_header
      _
    $region3: #{tpu_custom_call.1} parent=1 // loop_header
      %s19 = sphi 0, %s23
      %p20 = scmp.ge.s32.totalorder %s19, 4
      %s29 = sphi 0, %s31
      %s32 = sphi 0, %s29
      %s33 = sphi 0, %s32
      %s49 = sphi 0, %s33
      %s53 = sphi 0, %s53
      %s55 = sphi 0, %s53
      %s56 = sphi 0, %s55
      %s70 = sphi 0, %s56
      %s74 = sphi 0, %s74
      %s76 = sphi 0, %s74
      %s77 = sphi 0, %s76
      %s91 = sphi 0, %s77
      %s95 = sphi 0, %s95
      %s97 = sphi 0, %s95
      %s98 = sphi 0, %s97
      %s112 = sphi 0, %s98
      %s116 = sphi 0, %s116
      %s118 = sphi 0, %s116
      %s119 = sphi 0, %s118
      %s133 = sphi 0, %s119
      %s137 = sphi 0, %s137
      %s139 = sphi 0, %s137
      %s140 = sphi 0, %s139
      %s154 = sphi 0, %s140
      %s158 = sphi 0, %s158
      %s160 = sphi 0, %s158
      %s161 = sphi 0, %s160
      %s175 = sphi 0, %s161
      %s179 = sphi 0, %s179
      %s181 = sphi 0, %s179
      %s182 = sphi 0, %s181
      %s196 = sphi 0, %s182
      %s200 = sphi 0, %s200
      %s202 = sphi 0, %s200
      %s203 = sphi 0, %s202
      %s217 = sphi 0, %s203
      %s221 = sphi 0, %s221
      %s223 = sphi 0, %s221
      %s224 = sphi 0, %s223
      %s238 = sphi 0, %s224
      %s244 = sphi 0, %s246
      %s247 = sphi 0, %s244
      %s248 = sphi 0, %s247
      %s264 = sphi 0, %s248
    $region4: #{tpu_custom_call.1} parent=1 // loop_header_branch
      %22 = sbr.rel (%p20) target = $region8
    $region5: #{tpu_custom_call.1} parent=1 // loop_body
      %s24 = ssub.s32 %s19, 1
      %s25 = ssub.s32 %s19, 2
      %s26 = sadd.s32 %s19, 1
      %s27 = ssub.s32 %s19, %s26
      %p28 = scmp.eq.s32.totalorder %s27, 0
      %s30 = sadd.s32 %s29, 1
      %s31 = scalar_select %p28, %s29, %s30
      %p34 = pneg %p28
      %p35 = scmp.eq.s32.totalorder %s19, 1
      %p36 = por %p34, %p35
      %p37 = scmp.ne.s32.totalorder %s29, %s32
      %p38 = scmp.eq.s32.totalorder %s19, 0
      %p39 = por %p37, %p38
      %p40 = scmp.ne.s32.totalorder %s29, %s32
      %p41 = scmp.eq.s32.totalorder %s24, 1
      %p42 = por %p40, %p41
      %p43 = scmp.ne.s32.totalorder %s32, %s33
      %p44 = scmp.eq.s32.totalorder %s24, 0
      %p45 = por %p43, %p44
      %p46 = scmp.ne.s32.totalorder %s32, %s33
      %p47 = scmp.eq.s32.totalorder %s25, 1
      %p48 = por %p46, %p47
      %p50 = scmp.ne.s32.totalorder %s33, %s49
      %p51 = scmp.eq.s32.totalorder %s25, 0
      %p52 = por %p50, %p51
      %s54 = sadd.s32 %s53, 1
      %p57 = scmp.eq.s32.totalorder %s19, 1
      %p58 = scmp.ne.s32.totalorder %s53, %s55
      %p59 = scmp.eq.s32.totalorder %s19, 0
      %p60 = por %p58, %p59
      %p61 = scmp.ne.s32.totalorder %s53, %s55
      %p62 = scmp.eq.s32.totalorder %s24, 1
      %p63 = por %p61, %p62
      %p64 = scmp.ne.s32.totalorder %s55, %s56
      %p65 = scmp.eq.s32.totalorder %s24, 0
      %p66 = por %p64, %p65
      %p67 = scmp.ne.s32.totalorder %s55, %s56
      %p68 = scmp.eq.s32.totalorder %s25, 1
      %p69 = por %p67, %p68
      %p71 = scmp.ne.s32.totalorder %s56, %s70
      %p72 = scmp.eq.s32.totalorder %s25, 0
      %p73 = por %p71, %p72
      %s75 = sadd.s32 %s74, 1
      %p78 = scmp.eq.s32.totalorder %s19, 1
      %p79 = scmp.ne.s32.totalorder %s74, %s76
      %p80 = scmp.eq.s32.totalorder %s19, 0
      %p81 = por %p79, %p80
      %p82 = scmp.ne.s32.totalorder %s74, %s76
      %p83 = scmp.eq.s32.totalorder %s24, 1
      %p84 = por %p82, %p83
      %p85 = scmp.ne.s32.totalorder %s76, %s77
      %p86 = scmp.eq.s32.totalorder %s24, 0
      %p87 = por %p85, %p86
      %p88 = scmp.ne.s32.totalorder %s76, %s77
      %p89 = scmp.eq.s32.totalorder %s25, 1
      %p90 = por %p88, %p89
      %p92 = scmp.ne.s32.totalorder %s77, %s91
      %p93 = scmp.eq.s32.totalorder %s25, 0
      %p94 = por %p92, %p93
      %s96 = sadd.s32 %s95, 1
      %p99 = scmp.eq.s32.totalorder %s19, 1
      %p100 = scmp.ne.s32.totalorder %s95, %s97
      %p101 = scmp.eq.s32.totalorder %s19, 0
      %p102 = por %p100, %p101
      %p103 = scmp.ne.s32.totalorder %s95, %s97
      %p104 = scmp.eq.s32.totalorder %s24, 1
      %p105 = por %p103, %p104
      %p106 = scmp.ne.s32.totalorder %s97, %s98
      %p107 = scmp.eq.s32.totalorder %s24, 0
      %p108 = por %p106, %p107
      %p109 = scmp.ne.s32.totalorder %s97, %s98
      %p110 = scmp.eq.s32.totalorder %s25, 1
      %p111 = por %p109, %p110
      %p113 = scmp.ne.s32.totalorder %s98, %s112
      %p114 = scmp.eq.s32.totalorder %s25, 0
      %p115 = por %p113, %p114
      %s117 = sadd.s32 %s116, 1
      %p120 = scmp.eq.s32.totalorder %s19, 1
      %p121 = scmp.ne.s32.totalorder %s116, %s118
      %p122 = scmp.eq.s32.totalorder %s19, 0
      %p123 = por %p121, %p122
      %p124 = scmp.ne.s32.totalorder %s116, %s118
      %p125 = scmp.eq.s32.totalorder %s24, 1
      %p126 = por %p124, %p125
      %p127 = scmp.ne.s32.totalorder %s118, %s119
      %p128 = scmp.eq.s32.totalorder %s24, 0
      %p129 = por %p127, %p128
      %p130 = scmp.ne.s32.totalorder %s118, %s119
      %p131 = scmp.eq.s32.totalorder %s25, 1
      %p132 = por %p130, %p131
      %p134 = scmp.ne.s32.totalorder %s119, %s133
      %p135 = scmp.eq.s32.totalorder %s25, 0
      %p136 = por %p134, %p135
      %s138 = sadd.s32 %s137, 1
      %p141 = scmp.eq.s32.totalorder %s19, 1
      %p142 = scmp.ne.s32.totalorder %s137, %s139
      %p143 = scmp.eq.s32.totalorder %s19, 0
      %p144 = por %p142, %p143
      %p145 = scmp.ne.s32.totalorder %s137, %s139
      %p146 = scmp.eq.s32.totalorder %s24, 1
      %p147 = por %p145, %p146
      %p148 = scmp.ne.s32.totalorder %s139, %s140
      %p149 = scmp.eq.s32.totalorder %s24, 0
      %p150 = por %p148, %p149
      %p151 = scmp.ne.s32.totalorder %s139, %s140
      %p152 = scmp.eq.s32.totalorder %s25, 1
      %p153 = por %p151, %p152
      %p155 = scmp.ne.s32.totalorder %s140, %s154
      %p156 = scmp.eq.s32.totalorder %s25, 0
      %p157 = por %p155, %p156
      %s159 = sadd.s32 %s158, 1
      %p162 = scmp.eq.s32.totalorder %s19, 1
      %p163 = scmp.ne.s32.totalorder %s158, %s160
      %p164 = scmp.eq.s32.totalorder %s19, 0
      %p165 = por %p163, %p164
      %p166 = scmp.ne.s32.totalorder %s158, %s160
      %p167 = scmp.eq.s32.totalorder %s24, 1
      %p168 = por %p166, %p167
      %p169 = scmp.ne.s32.totalorder %s160, %s161
      %p170 = scmp.eq.s32.totalorder %s24, 0
      %p171 = por %p169, %p170
      %p172 = scmp.ne.s32.totalorder %s160, %s161
      %p173 = scmp.eq.s32.totalorder %s25, 1
      %p174 = por %p172, %p173
      %p176 = scmp.ne.s32.totalorder %s161, %s175
      %p177 = scmp.eq.s32.totalorder %s25, 0
      %p178 = por %p176, %p177
      %s180 = sadd.s32 %s179, 1
      %p183 = scmp.eq.s32.totalorder %s19, 1
      %p184 = scmp.ne.s32.totalorder %s179, %s181
      %p185 = scmp.eq.s32.totalorder %s19, 0
      %p186 = por %p184, %p185
      %p187 = scmp.ne.s32.totalorder %s179, %s181
      %p188 = scmp.eq.s32.totalorder %s24, 1
      %p189 = por %p187, %p188
      %p190 = scmp.ne.s32.totalorder %s181, %s182
      %p191 = scmp.eq.s32.totalorder %s24, 0
      %p192 = por %p190, %p191
      %p193 = scmp.ne.s32.totalorder %s181, %s182
      %p194 = scmp.eq.s32.totalorder %s25, 1
      %p195 = por %p193, %p194
      %p197 = scmp.ne.s32.totalorder %s182, %s196
      %p198 = scmp.eq.s32.totalorder %s25, 0
      %p199 = por %p197, %p198
      %s201 = sadd.s32 %s200, 1
      %p204 = scmp.eq.s32.totalorder %s19, 1
      %p205 = scmp.ne.s32.totalorder %s200, %s202
      %p206 = scmp.eq.s32.totalorder %s19, 0
      %p207 = por %p205, %p206
      %p208 = scmp.ne.s32.totalorder %s200, %s202
      %p209 = scmp.eq.s32.totalorder %s24, 1
      %p210 = por %p208, %p209
      %p211 = scmp.ne.s32.totalorder %s202, %s203
      %p212 = scmp.eq.s32.totalorder %s24, 0
      %p213 = por %p211, %p212
      %p214 = scmp.ne.s32.totalorder %s202, %s203
      %p215 = scmp.eq.s32.totalorder %s25, 1
      %p216 = por %p214, %p215
      %p218 = scmp.ne.s32.totalorder %s203, %s217
      %p219 = scmp.eq.s32.totalorder %s25, 0
      %p220 = por %p218, %p219
      %s222 = sadd.s32 %s221, 1
      %p225 = scmp.eq.s32.totalorder %s19, 1
      %p226 = scmp.ne.s32.totalorder %s221, %s223
      %p227 = scmp.eq.s32.totalorder %s19, 0
      %p228 = por %p226, %p227
      %p229 = scmp.ne.s32.totalorder %s221, %s223
      %p230 = scmp.eq.s32.totalorder %s24, 1
      %p231 = por %p229, %p230
      %p232 = scmp.ne.s32.totalorder %s223, %s224
      %p233 = scmp.eq.s32.totalorder %s24, 0
      %p234 = por %p232, %p233
      %p235 = scmp.ne.s32.totalorder %s223, %s224
      %p236 = scmp.eq.s32.totalorder %s25, 1
      %p237 = por %p235, %p236
      %p239 = scmp.ne.s32.totalorder %s224, %s238
      %p240 = scmp.eq.s32.totalorder %s25, 0
      %p241 = por %p239, %p240
      %s242 = ssub.s32 %s19, %s26
      %p243 = scmp.eq.s32.totalorder %s242, 0
      %s245 = sadd.s32 %s244, 1
      %s246 = scalar_select %p243, %s244, %s245
      %p249 = pneg %p243
      %p250 = scmp.eq.s32.totalorder %s19, 1
      %p251 = por %p249, %p250
      %p252 = scmp.ne.s32.totalorder %s244, %s247
      %p253 = scmp.eq.s32.totalorder %s19, 0
      %p254 = por %p252, %p253
      %p255 = scmp.ne.s32.totalorder %s244, %s247
      %p256 = scmp.eq.s32.totalorder %s24, 1
      %p257 = por %p255, %p256
      %p258 = scmp.ne.s32.totalorder %s247, %s248
      %p259 = scmp.eq.s32.totalorder %s24, 0
      %p260 = por %p258, %p259
      %p261 = scmp.ne.s32.totalorder %s247, %s248
      %p262 = scmp.eq.s32.totalorder %s25, 1
      %p263 = por %p261, %p262
      %p265 = scmp.ne.s32.totalorder %s248, %s264
      %p266 = scmp.eq.s32.totalorder %s25, 0
      %p267 = por %p265, %p266
      %p268 = scmp.le.s32.totalorder 1, %s19
      %p269 = scmp.lt.s32.totalorder %s19, 3
      %p270 = pnand %p268, %p269
      %p271 = pneg %p270
      // Predicated region
      $region9: #{tpu_custom_call.1} parent=5 // pred_check
        _
      $region10: #{tpu_custom_call.1} parent=5 // pred_check_branch
        %273 = sbr.rel (%p270) target = $region12
      $region11: #{tpu_custom_call.1} parent=5 // pred_region
        %s274 = ssub.s32 %s19, 1
        // Predicated region
        $region13: #{tpu_custom_call.1} parent=11 // pred_check
          %p275 = pneg %p66
        $region14: #{tpu_custom_call.1} parent=11 // pred_check_branch
          %277 = sbr.rel (%p275) target = $region16
        $region15: #{tpu_custom_call.1} parent=11 // pred_region
          _
        $region16: #{tpu_custom_call.1} parent=11 // pred_fallthru
          _
        // Predicated region
        $region17: #{tpu_custom_call.1} parent=11 // pred_check
          %p278 = pneg %p87
        $region18: #{tpu_custom_call.1} parent=11 // pred_check_branch
          %280 = sbr.rel (%p278) target = $region20
        $region19: #{tpu_custom_call.1} parent=11 // pred_region
          _
        $region20: #{tpu_custom_call.1} parent=11 // pred_fallthru
          _
        // Predicated region
        $region21: #{tpu_custom_call.1} parent=11 // pred_check
          %p281 = pneg %p108
        $region22: #{tpu_custom_call.1} parent=11 // pred_check_branch
          %283 = sbr.rel (%p281) target = $region24
        $region23: #{tpu_custom_call.1} parent=11 // pred_region
          _
        $region24: #{tpu_custom_call.1} parent=11 // pred_fallthru
          _
        // Predicated region
        $region25: #{tpu_custom_call.1} parent=11 // pred_check
          %p284 = pneg %p129
        $region26: #{tpu_custom_call.1} parent=11 // pred_check_branch
          %286 = sbr.rel (%p284) target = $region28
        $region27: #{tpu_custom_call.1} parent=11 // pred_region
          _
        $region28: #{tpu_custom_call.1} parent=11 // pred_fallthru
          _
        // Predicated region
        $region29: #{tpu_custom_call.1} parent=11 // pred_check
          %p287 = pneg %p150
        $region30: #{tpu_custom_call.1} parent=11 // pred_check_branch
          %289 = sbr.rel (%p287) target = $region32
        $region31: #{tpu_custom_call.1} parent=11 // pred_region
          _
        $region32: #{tpu_custom_call.1} parent=11 // pred_fallthru
          _
        // Predicated region
        $region33: #{tpu_custom_call.1} parent=11 // pred_check
          %p290 = pneg %p171
        $region34: #{tpu_custom_call.1} parent=11 // pred_check_branch
          %292 = sbr.rel (%p290) target = $region36
        $region35: #{tpu_custom_call.1} parent=11 // pred_region
          _
        $region36: #{tpu_custom_call.1} parent=11 // pred_fallthru
          _
        // Predicated region
        $region37: #{tpu_custom_call.1} parent=11 // pred_check
          %p293 = pneg %p192
        $region38: #{tpu_custom_call.1} parent=11 // pred_check_branch
          %295 = sbr.rel (%p293) target = $region40
        $region39: #{tpu_custom_call.1} parent=11 // pred_region
          _
        $region40: #{tpu_custom_call.1} parent=11 // pred_fallthru
          _
        // Predicated region
        $region41: #{tpu_custom_call.1} parent=11 // pred_check
          %p296 = pneg %p213
        $region42: #{tpu_custom_call.1} parent=11 // pred_check_branch
          %298 = sbr.rel (%p296) target = $region44
        $region43: #{tpu_custom_call.1} parent=11 // pred_region
          _
        $region44: #{tpu_custom_call.1} parent=11 // pred_fallthru
          _
        // Predicated region
        $region45: #{tpu_custom_call.1} parent=11 // pred_check
          %p299 = pneg %p234
        $region46: #{tpu_custom_call.1} parent=11 // pred_check_branch
          %301 = sbr.rel (%p299) target = $region48
        $region47: #{tpu_custom_call.1} parent=11 // pred_region
          _
        $region48: #{tpu_custom_call.1} parent=11 // pred_fallthru
          _
      $region12: #{tpu_custom_call.1} parent=5 // pred_fallthru
        _
      %p302 = scmp.lt.s32.totalorder %s19, 2
      // Predicated region
      $region49: #{tpu_custom_call.1} parent=5 // pred_check
        %p303 = pneg %p302
      $region50: #{tpu_custom_call.1} parent=5 // pred_check_branch
        %305 = sbr.rel (%p303) target = $region52
      $region51: #{tpu_custom_call.1} parent=5 // pred_region
        // Predicated region
        $region53: #{tpu_custom_call.1} parent=51 // pred_check
          %p306 = pneg %p39
        $region54: #{tpu_custom_call.1} parent=51 // pred_check_branch
          %308 = sbr.rel (%p306) target = $region56
        $region55: #{tpu_custom_call.1} parent=51 // pred_region
          %s309 = sand.u32 %s29, 1
          %s310 = sand.u32 %s29, 1
          %s311 = smul.addr %s310, 28
          %s312 = scalar_lea.vmem [#allocation2], %s311
          %s313 = smul.addr %s19, 4
          %s314 = scalar_lea.vmem %s0, %s313
          // Predicated region
          $region57: #{tpu_custom_call.1} parent=55 // pred_check
            _
          $region58: #{tpu_custom_call.1} parent=55 // pred_check_branch
            %316 = sbr.rel (0) target = $region60
          $region59: #{tpu_custom_call.1} parent=55 // pred_region
            // Predicated region
            $region61: #{tpu_custom_call.1} parent=59 // pred_check
              _
            $region62: #{tpu_custom_call.1} parent=59 // pred_check_branch
              %318 = sbr.rel target = $region64
            $region63: #{tpu_custom_call.1} parent=59 // pred_region
              // Predicated region
              $region76: #{tpu_custom_call.1} parent=63 // pred_check
                _
              $region77: #{tpu_custom_call.1} parent=63 // pred_check_branch
                %345 = sbr.rel (0) target = $region79
              $region78: #{tpu_custom_call.1} parent=63 // pred_region
                loop: start=0, step=1, limit=1
                $region80: #{tpu_custom_call.1} parent=78 // loop_pre_header
                  _
                $region81: #{tpu_custom_call.1} parent=78 // loop_header
                  %s347 = sphi 0, %s351
                  %p348 = scmp.ge.s32.totalorder %s347, 1
                  %s352 = sphi %s314, %s314
                  %s353 = sphi %s312, %s312
                $region82: #{tpu_custom_call.1} parent=78 // loop_header_branch
                  %350 = sbr.rel (%p348) target = $region86
                $region83: #{tpu_custom_call.1} parent=78 // loop_body
                  _
                $region84: #{tpu_custom_call.1} parent=78 // loop_footer
                  %s351 = sadd.s32 1, %s347
                $region85: #{tpu_custom_call.1} parent=78 // loop_footer_branch
                  %346 = sbr.rel target = $region81
                $region86: #{tpu_custom_call.1} parent=78 // loop_exit
                  _
                loop: start=0, step=1, limit=1
                $region87: #{tpu_custom_call.1} parent=78 // loop_pre_header
                  _
                $region88: #{tpu_custom_call.1} parent=78 // loop_header
                  %s356 = sphi 0, %s360
                  %p357 = scmp.ge.s32.totalorder %s356, 1
                  %s361 = sphi %s314, %s314
                  %s362 = sphi %s312, %s312
                $region89: #{tpu_custom_call.1} parent=78 // loop_header_branch
                  %359 = sbr.rel (%p357) target = $region93
                $region90: #{tpu_custom_call.1} parent=78 // loop_body
                  %v363 = vld [vmem:[%s361] sm:$0xf]
                  %364 = vst [vmem:[%s362] sm:$0xf] %v363
                  %v365 = vld [vmem:[%s361 + $0x8] sm:$0xf]
                  %366 = vst [vmem:[%s362 + $0x4] sm:$0xf] %v365
                  %v367 = vld [vmem:[%s361 + $0x10] sm:$0xf]
                  %368 = vst [vmem:[%s362 + $0x8] sm:$0xf] %v367
                  %v369 = vld [vmem:[%s361 + $0x18] sm:$0xf]
                  %370 = vst [vmem:[%s362 + $0xc] sm:$0xf] %v369
                  %v371 = vld [vmem:[%s361 + $0x20] sm:$0xf]
                  %372 = vst [vmem:[%s362 + $0x10] sm:$0xf] %v371
                  %v373 = vld [vmem:[%s361 + $0x28] sm:$0xf]
                  %374 = vst [vmem:[%s362 + $0x14] sm:$0xf] %v373
                  %v375 = vld [vmem:[%s361 + $0x30] sm:$0xf]
                  %376 = vst [vmem:[%s362 + $0x18] sm:$0xf] %v375
                $region91: #{tpu_custom_call.1} parent=78 // loop_footer
                  %s360 = sadd.s32 1, %s356
                $region92: #{tpu_custom_call.1} parent=78 // loop_footer_branch
                  %355 = sbr.rel target = $region88
                $region93: #{tpu_custom_call.1} parent=78 // loop_exit
                  _
              $region79: #{tpu_custom_call.1} parent=63 // pred_fallthru
                _
            $region64: #{tpu_custom_call.1} parent=59 // pred_fallthru
              _
            // Predicated region
            $region65: #{tpu_custom_call.1} parent=59 // pred_check
              _
            $region66: #{tpu_custom_call.1} parent=59 // pred_check_branch
              %320 = sbr.rel (0) target = $region68
            $region67: #{tpu_custom_call.1} parent=59 // pred_region
              loop: start=0, step=1, limit=1
              $region69: #{tpu_custom_call.1} parent=67 // loop_pre_header
                _
              $region70: #{tpu_custom_call.1} parent=67 // loop_header
                %s323 = sphi 0, %s327
                %p324 = scmp.ge.s32.totalorder %s323, 1
                %s328 = sphi %s314, %s314
                %s329 = sphi %s312, %s312
              $region71: #{tpu_custom_call.1} parent=67 // loop_header_branch
                %326 = sbr.rel (%p324) target = $region75
              $region72: #{tpu_custom_call.1} parent=67 // loop_body
                %v330 = vld [vmem:[%s328] sm:$0xf]
                %331 = vst [vmem:[%s329] sm:$0xf] %v330
                %v332 = vld [vmem:[%s328 + $0x8] sm:$0xf]
                %333 = vst [vmem:[%s329 + $0x4] sm:$0xf] %v332
                %v334 = vld [vmem:[%s328 + $0x10] sm:$0xf]
                %335 = vst [vmem:[%s329 + $0x8] sm:$0xf] %v334
                %v336 = vld [vmem:[%s328 + $0x18] sm:$0xf]
                %337 = vst [vmem:[%s329 + $0xc] sm:$0xf] %v336
                %v338 = vld [vmem:[%s328 + $0x20] sm:$0xf]
                %339 = vst [vmem:[%s329 + $0x10] sm:$0xf] %v338
                %v340 = vld [vmem:[%s328 + $0x28] sm:$0xf]
                %341 = vst [vmem:[%s329 + $0x14] sm:$0xf] %v340
                %v342 = vld [vmem:[%s328 + $0x30] sm:$0xf]
                %343 = vst [vmem:[%s329 + $0x18] sm:$0xf] %v342
              $region73: #{tpu_custom_call.1} parent=67 // loop_footer
                %s327 = sadd.s32 1, %s323
              $region74: #{tpu_custom_call.1} parent=67 // loop_footer_branch
                %322 = sbr.rel target = $region70
              $region75: #{tpu_custom_call.1} parent=67 // loop_exit
                _
            $region68: #{tpu_custom_call.1} parent=59 // pred_fallthru
              _
          $region60: #{tpu_custom_call.1} parent=55 // pred_fallthru
            _
          %377 = vnop
        $region56: #{tpu_custom_call.1} parent=51 // pred_fallthru
          _
      $region52: #{tpu_custom_call.1} parent=5 // pred_fallthru
        _
      %p378 = scmp.le.s32.totalorder 1, %s19
      %p379 = scmp.lt.s32.totalorder %s19, 3
      %p380 = pnand %p378, %p379
      %p381 = pneg %p380
      // Predicated region
      $region94: #{tpu_custom_call.1} parent=5 // pred_check
        _
      $region95: #{tpu_custom_call.1} parent=5 // pred_check_branch
        %383 = sbr.rel (%p380) target = $region97
      $region96: #{tpu_custom_call.1} parent=5 // pred_region
        %s384 = ssub.s32 %s19, 1
        %s385 = sand.u32 %s32, 1
        %s386 = sand.u32 %s32, 1
        %s387 = smul.addr %s386, 28
        %s388 = scalar_lea.vmem [#allocation2], %s387
        // Predicated region
        $region98: #{tpu_custom_call.1} parent=96 // pred_check
          %p389 = pneg %p45
        $region99: #{tpu_custom_call.1} parent=96 // pred_check_branch
          %391 = sbr.rel (%p389) target = $region101
        $region100: #{tpu_custom_call.1} parent=96 // pred_region
          _
        $region101: #{tpu_custom_call.1} parent=96 // pred_fallthru
          _
        %s392 = sand.u32 %s32, 1
        %s393 = sand.u32 %s32, 1
        %s394 = smul.addr %s393, 28
        %s395 = scalar_lea.vmem [#allocation2], %s394
        %p396 = pneg %p45
        %p397 = pneg %p42
        %p398 = pneg %p66
        %p399 = pneg %p63
        %p400 = pneg %p87
        %p401 = pneg %p84
        %p402 = pneg %p108
        %p403 = pneg %p105
        %p404 = pneg %p129
        %p405 = pneg %p126
        %p406 = pneg %p150
        %p407 = pneg %p147
        %p408 = pneg %p171
        %p409 = pneg %p168
        %p410 = pneg %p192
        %p411 = pneg %p189
        %p412 = pneg %p213
        %p413 = pneg %p210
        %p414 = pneg %p234
        %p415 = pneg %p231
        %p416 = pneg %p260
        %p417 = pneg %p257
        %s418 = sand.u32 %s247, 1
        %s419 = scalar_lea.sflag [#allocation4], %s418
        %s420 = sand.u32 %s247, 1
        %s421 = scalar_lea.vmem [#allocation3], %s420
        %v423 = vld [vmem:[%s388] sm:$0xf]
        %v424 = vld [vmem:[%s388 + $0x4] sm:$0xf]
        %v425 = vld [vmem:[%s388 + $0x8] sm:$0xf]
        %v426 = vld [vmem:[%s388 + $0xc] sm:$0xf]
        %v427 = vld [vmem:[%s388 + $0x10] sm:$0xf]
        %v428 = vld [vmem:[%s388 + $0x14] sm:$0xf]
        %v429 = vld [vmem:[%s388 + $0x18] sm:$0xf]
        %v430 = vld [vmem:[%s1] sm:$0xf]
        %v431 = vld [vmem:[%s1 + $0x4] sm:$0xf]
        %v432 = vld [vmem:[%s1 + $0x8] sm:$0xf]
        %v433 = vld [vmem:[%s1 + $0xc] sm:$0xf]
        %v434 = vld [vmem:[%s1 + $0x10] sm:$0xf]
        %v435 = vld [vmem:[%s1 + $0x14] sm:$0xf]
        %v436 = vld [vmem:[%s1 + $0x18] sm:$0xf]
        %v437 = vld [vmem:[%s1 + $0x1c] sm:$0xf]
        %v438 = vld [vmem:[%s1 + $0x20] sm:$0xf]
        %v439 = vld [vmem:[%s1 + $0x24] sm:$0xf]
        %v440 = vld [vmem:[%s1 + $0x28] sm:$0xf]
        %v441 = vld [vmem:[%s1 + $0x2c] sm:$0xf]
        %v442 = vld [vmem:[%s1 + $0x30] sm:$0xf]
        %v443 = vld [vmem:[%s1 + $0x34] sm:$0xf]
        %v444 = vld [vmem:[%s1 + $0x38] sm:$0xf]
        %v445 = vld [vmem:[%s1 + $0x3c] sm:$0xf]
        %v446 = vld [vmem:[%s1 + $0x40] sm:$0xf]
        %v447 = vld [vmem:[%s1 + $0x44] sm:$0xf]
        %v448 = vld [vmem:[%s1 + $0x48] sm:$0xf]
        %v449 = vld [vmem:[%s1 + $0x4c] sm:$0xf]
        %v450 = vld [vmem:[%s1 + $0x50] sm:$0xf]
        %v451 = vld [vmem:[%s1 + $0x54] sm:$0xf]
        %v452 = vld [vmem:[%s1 + $0x58] sm:$0xf]
        %v453 = vld [vmem:[%s1 + $0x5c] sm:$0xf]
        %v454 = vld [vmem:[%s1 + $0x60] sm:$0xf]
        %v455 = vld [vmem:[%s1 + $0x64] sm:$0xf]
        %v456 = vld [vmem:[%s1 + $0x68] sm:$0xf]
        %v457 = vld [vmem:[%s1 + $0x6c] sm:$0xf]
        %v458 = vld [vmem:[%s1 + $0x70] sm:$0xf]
        %v459 = vld [vmem:[%s1 + $0x74] sm:$0xf]
        %v460 = vld [vmem:[%s9] sm:$0xff]
        %v461 = vld [vmem:[%s9 + $0x8] sm:$0xff]
        %v462 = vld [vmem:[%s9 + $0x10] sm:$0xff]
        %v463 = vld [vmem:[%s9 + $0x18] sm:$0xff]
        %v464 = vld [vmem:[%s9 + $0x20] sm:$0xff]
        %v465 = vld [vmem:[%s9 + $0x28] sm:$0xff]
        %v466 = vld [vmem:[%s9 + $0x30] sm:$0xff]
        %v467 = vld [vmem:[%s9 + $0x38] sm:$0xff]
        %v468 = vld [vmem:[%s9 + $0x40] sm:$0xff]
        %v469 = vld [vmem:[%s9 + $0x48] sm:$0xff]
        %v470 = vld [vmem:[%s9 + $0x50] sm:$0xff]
        %v471 = vld [vmem:[%s9 + $0x58] sm:$0xff]
        %v472 = vld [vmem:[%s9 + $0x60] sm:$0xff]
        %v473 = vld [vmem:[%s9 + $0x68] sm:$0xff]
        %v474 = vld [vmem:[%s9 + $0x70] sm:$0xff]
        %v475 = vld [vmem:[%s9 + $0x78] sm:$0xff]
        %v476 = vld [vmem:[%s9 + $0x80] sm:$0xff]
        %v477 = vld [vmem:[%s9 + $0x88] sm:$0xff]
        %v478 = vld [vmem:[%s9 + $0x90] sm:$0xff]
        %v479 = vld [vmem:[%s9 + $0x98] sm:$0xff]
        %v480 = vld [vmem:[%s9 + $0xa0] sm:$0xff]
        %v481 = vld [vmem:[%s9 + $0xa8] sm:$0xff]
        %v482 = vld [vmem:[%s9 + $0xb0] sm:$0xff]
        %v483 = vld [vmem:[%s9 + $0xb8] sm:$0xff]
        %v484 = vld [vmem:[%s9 + $0xc0] sm:$0xff]
        %v485 = vld [vmem:[%s9 + $0xc8] sm:$0xff]
        %v486 = vld [vmem:[%s9 + $0xd0] sm:$0xff]
        %v487 = vld [vmem:[%s9 + $0xd8] sm:$0xff]
        %v488 = vld [vmem:[%s9 + $0xe0] sm:$0xff]
        %v489 = vld [vmem:[%s9 + $0xe8] sm:$0xff]
        %491 = vset.pattern.permute.xlu0 0
        %492 = vperm.xlu0 %491, %v460
        %v493 = vpop.permute.xlu0 %492
        %496 = vset.pattern.permute.xlu0 0
        %497 = vperm.xlu0 %496, %v461
        %v498 = vpop.permute.xlu0 %497
        %501 = vset.pattern.permute.xlu0 0
        %502 = vperm.xlu0 %501, %v462
        %v503 = vpop.permute.xlu0 %502
        %506 = vset.pattern.permute.xlu0 0
        %507 = vperm.xlu0 %506, %v463
        %v508 = vpop.permute.xlu0 %507
        %511 = vset.pattern.permute.xlu0 0
        %512 = vperm.xlu0 %511, %v464
        %v513 = vpop.permute.xlu0 %512
        %516 = vset.pattern.permute.xlu0 0
        %517 = vperm.xlu0 %516, %v465
        %v518 = vpop.permute.xlu0 %517
        %521 = vset.pattern.permute.xlu0 0
        %522 = vperm.xlu0 %521, %v466
        %v523 = vpop.permute.xlu0 %522
        %526 = vset.pattern.permute.xlu0 0
        %527 = vperm.xlu0 %526, %v467
        %v528 = vpop.permute.xlu0 %527
        %531 = vset.pattern.permute.xlu0 0
        %532 = vperm.xlu0 %531, %v468
        %v533 = vpop.permute.xlu0 %532
        %536 = vset.pattern.permute.xlu0 0
        %537 = vperm.xlu0 %536, %v469
        %v538 = vpop.permute.xlu0 %537
        %541 = vset.pattern.permute.xlu0 0
        %542 = vperm.xlu0 %541, %v470
        %v543 = vpop.permute.xlu0 %542
        %546 = vset.pattern.permute.xlu0 0
        %547 = vperm.xlu0 %546, %v471
        %v548 = vpop.permute.xlu0 %547
        %551 = vset.pattern.permute.xlu0 0
        %552 = vperm.xlu0 %551, %v472
        %v553 = vpop.permute.xlu0 %552
        %556 = vset.pattern.permute.xlu0 0
        %557 = vperm.xlu0 %556, %v473
        %v558 = vpop.permute.xlu0 %557
        %561 = vset.pattern.permute.xlu0 0
        %562 = vperm.xlu0 %561, %v474
        %v563 = vpop.permute.xlu0 %562
        %566 = vset.pattern.permute.xlu0 0
        %567 = vperm.xlu0 %566, %v475
        %v568 = vpop.permute.xlu0 %567
        %571 = vset.pattern.permute.xlu0 0
        %572 = vperm.xlu0 %571, %v476
        %v573 = vpop.permute.xlu0 %572
        %576 = vset.pattern.permute.xlu0 0
        %577 = vperm.xlu0 %576, %v477
        %v578 = vpop.permute.xlu0 %577
        %581 = vset.pattern.permute.xlu0 0
        %582 = vperm.xlu0 %581, %v478
        %v583 = vpop.permute.xlu0 %582
        %586 = vset.pattern.permute.xlu0 0
        %587 = vperm.xlu0 %586, %v479
        %v588 = vpop.permute.xlu0 %587
        %591 = vset.pattern.permute.xlu0 0
        %592 = vperm.xlu0 %591, %v480
        %v593 = vpop.permute.xlu0 %592
        %596 = vset.pattern.permute.xlu0 0
        %597 = vperm.xlu0 %596, %v481
        %v598 = vpop.permute.xlu0 %597
        %601 = vset.pattern.permute.xlu0 0
        %602 = vperm.xlu0 %601, %v482
        %v603 = vpop.permute.xlu0 %602
        %606 = vset.pattern.permute.xlu0 0
        %607 = vperm.xlu0 %606, %v483
        %v608 = vpop.permute.xlu0 %607
        %611 = vset.pattern.permute.xlu0 0
        %612 = vperm.xlu0 %611, %v484
        %v613 = vpop.permute.xlu0 %612
        %616 = vset.pattern.permute.xlu0 0
        %617 = vperm.xlu0 %616, %v485
        %v618 = vpop.permute.xlu0 %617
        %621 = vset.pattern.permute.xlu0 0
        %622 = vperm.xlu0 %621, %v486
        %v623 = vpop.permute.xlu0 %622
        %626 = vset.pattern.permute.xlu0 0
        %627 = vperm.xlu0 %626, %v487
        %v628 = vpop.permute.xlu0 %627
        %631 = vset.pattern.permute.xlu0 0
        %632 = vperm.xlu0 %631, %v488
        %v633 = vpop.permute.xlu0 %632
        %636 = vset.pattern.permute.xlu0 0
        %637 = vperm.xlu0 %636, %v489
        %v638 = vpop.permute.xlu0 %637
        %v670 = vunpack.c.l.b16 %v430
        %v671 = vunpack.c.l.b16 %v431
        %v672 = vunpack.c.l.b16 %v432
        %v673 = vunpack.c.l.b16 %v433
        %v674 = vunpack.c.l.b16 %v434
        %v675 = vunpack.c.l.b16 %v435
        %v676 = vunpack.c.l.b16 %v436
        %v677 = vunpack.c.l.b16 %v437
        %v678 = vunpack.c.l.b16 %v438
        %v679 = vunpack.c.l.b16 %v439
        %v680 = vunpack.c.l.b16 %v440
        %v681 = vunpack.c.l.b16 %v441
        %v682 = vunpack.c.l.b16 %v442
        %v683 = vunpack.c.l.b16 %v443
        %v684 = vunpack.c.l.b16 %v444
        %v685 = vunpack.c.l.b16 %v445
        %v686 = vunpack.c.l.b16 %v446
        %v687 = vunpack.c.l.b16 %v447
        %v688 = vunpack.c.l.b16 %v448
        %v689 = vunpack.c.l.b16 %v449
        %v690 = vunpack.c.l.b16 %v450
        %v691 = vunpack.c.l.b16 %v451
        %v692 = vunpack.c.l.b16 %v452
        %v693 = vunpack.c.l.b16 %v453
        %v694 = vunpack.c.l.b16 %v454
        %v695 = vunpack.c.l.b16 %v455
        %v696 = vunpack.c.l.b16 %v456
        %v697 = vunpack.c.l.b16 %v457
        %v698 = vunpack.c.l.b16 %v458
        %v699 = vunpack.c.l.b16 %v459
        %v700 = vpack.c.b16 %v671, %v670
        %v701 = vpack.c.b16 %v673, %v672
        %v702 = vpack.c.b16 %v675, %v674
        %v703 = vpack.c.b16 %v677, %v676
        %v704 = vpack.c.b16 %v679, %v678
        %v705 = vpack.c.b16 %v681, %v680
        %v706 = vpack.c.b16 %v683, %v682
        %v707 = vpack.c.b16 %v685, %v684
        %v708 = vpack.c.b16 %v687, %v686
        %v709 = vpack.c.b16 %v689, %v688
        %v710 = vpack.c.b16 %v691, %v690
        %v711 = vpack.c.b16 %v693, %v692
        %v712 = vpack.c.b16 %v695, %v694
        %v713 = vpack.c.b16 %v697, %v696
        %v714 = vpack.c.b16 %v699, %v698
        %v722 = vunpack.c.l.b16 %v423
        %v723 = vunpack.c.l.b16 %v424
        %v724 = vunpack.c.l.b16 %v425
        %v725 = vunpack.c.l.b16 %v426
        %v726 = vunpack.c.l.b16 %v427
        %v727 = vunpack.c.l.b16 %v428
        %v728 = vunpack.c.l.b16 %v429
        %v729 = vpack.c.b16 %v723, %v722
        %v730 = vpack.c.b16 %v725, %v724
        %v731 = vpack.c.b16 %v727, %v726
        %v732 = vpack.c.b16 %v728, %v728
        %vm736 = vcmask 457728
        %v738 = vsel %vm736, %v700, 0
        %v741 = vsel %vm736, %v701, 0
        %v744 = vsel %vm736, %v702, 0
        %v747 = vsel %vm736, %v703, 0
        %v750 = vsel %vm736, %v704, 0
        %v753 = vsel %vm736, %v705, 0
        %v756 = vsel %vm736, %v706, 0
        %v759 = vsel %vm736, %v707, 0
        %v762 = vsel %vm736, %v708, 0
        %v765 = vsel %vm736, %v709, 0
        %v768 = vsel %vm736, %v710, 0
        %v771 = vsel %vm736, %v711, 0
        %v774 = vsel %vm736, %v712, 0
        %v777 = vsel %vm736, %v713, 0
        %v780 = vsel %vm736, %v714, 0
        %vm782 = vcmask 1043456
        %v784 = vsel %vm782, %v732, 0
        %786 = vmatprep.subr.bf16.mxu0 0
        %787 = vmatpush1.bf16.msra.mxu0 %v729
        %788 = vmatprep.subr.bf16.mxu0 0
        %789 = vmatpush1.bf16.msra.mxu0 %v730
        %790 = vmatprep.subr.bf16.mxu0 0
        %791 = vmatpush1.bf16.msra.mxu0 %v731
        %792 = vmatprep.subr.bf16.mxu0 0
        %793 = vmatpush1.bf16.msra.mxu0 %v784
        %794 = vmatprep.subr.bf16.mxu0 0
        %795 = vmatpush1.bf16.msra.mxu0 0
        %796 = vmatprep.subr.bf16.mxu0 0
        %797 = vmatpush1.bf16.msra.mxu0 0
        %798 = vmatprep.subr.bf16.mxu0 0
        %799 = vmatpush1.bf16.msra.mxu0 0
        %800 = vmatprep.subr.bf16.mxu0 0
        %801 = vmatpush1.bf16.msra.mxu0 0
        %802 = vmatprep.subr.bf16.mxu0 0
        %803 = vmatpush1.bf16.msra.mxu0 0
        %804 = vmatprep.subr.bf16.mxu0 0
        %805 = vmatpush1.bf16.msra.mxu0 0
        %806 = vmatprep.subr.bf16.mxu0 0
        %807 = vmatpush1.bf16.msra.mxu0 0
        %808 = vmatprep.subr.bf16.mxu0 0
        %809 = vmatpush1.bf16.msra.mxu0 0
        %810 = vmatprep.subr.bf16.mxu0 0
        %811 = vmatpush1.bf16.msra.mxu0 0
        %812 = vmatprep.subr.bf16.mxu0 0
        %813 = vmatpush1.bf16.msra.mxu0 0
        %814 = vmatprep.subr.bf16.mxu0 0
        %815 = vmatpush1.bf16.msra.mxu0 0
        %816 = vmatprep.subr.bf16.mxu0 0
        %817 = vmatpush1.bf16.msra.mxu0 0
        %818 = vmatprep.mubr.bf16.mxu0 0
        %819 = vmatmul.mubr.bf16.gmra.mrb[0].mxu0 %v738
        %v820 = vpop.f32.mrb[0].mxu0
        %v821 = vadd.f32 %v493, %v820
        %v822 = vpop.f32.mrb[0].mxu0
        %v823 = vpop.f32.mrb[0].mxu0
        %v824 = vadd.f32 %v498, %v823
        %v825 = vpop.f32.mrb[0].mxu0
        %826 = vmatprep.mubr.bf16.mxu0 0
        %827 = vmatmul.mubr.bf16.gmra.mrb[0].mxu0 %v741
        %v828 = vpop.f32.mrb[0].mxu0
        %v829 = vadd.f32 %v503, %v828
        %v830 = vpop.f32.mrb[0].mxu0
        %v831 = vpop.f32.mrb[0].mxu0
        %v832 = vadd.f32 %v508, %v831
        %v833 = vpop.f32.mrb[0].mxu0
        %834 = vmatprep.mubr.bf16.mxu0 0
        %835 = vmatmul.mubr.bf16.gmra.mrb[0].mxu0 %v744
        %v836 = vpop.f32.mrb[0].mxu0
        %v837 = vadd.f32 %v513, %v836
        %v838 = vpop.f32.mrb[0].mxu0
        %v839 = vpop.f32.mrb[0].mxu0
        %v840 = vadd.f32 %v518, %v839
        %v841 = vpop.f32.mrb[0].mxu0
        %842 = vmatprep.mubr.bf16.mxu0 0
        %843 = vmatmul.mubr.bf16.gmra.mrb[0].mxu0 %v747
        %v844 = vpop.f32.mrb[0].mxu0
        %v845 = vadd.f32 %v523, %v844
        %v846 = vpop.f32.mrb[0].mxu0
        %v847 = vpop.f32.mrb[0].mxu0
        %v848 = vadd.f32 %v528, %v847
        %v849 = vpop.f32.mrb[0].mxu0
        %850 = vmatprep.mubr.bf16.mxu0 0
        %851 = vmatmul.mubr.bf16.gmra.mrb[0].mxu0 %v750
        %v852 = vpop.f32.mrb[0].mxu0
        %v853 = vadd.f32 %v533, %v852
        %v854 = vpop.f32.mrb[0].mxu0
        %v855 = vpop.f32.mrb[0].mxu0
        %v856 = vadd.f32 %v538, %v855
        %v857 = vpop.f32.mrb[0].mxu0
        %858 = vmatprep.mubr.bf16.mxu0 0
        %859 = vmatmul.mubr.bf16.gmra.mrb[0].mxu0 %v753
        %v860 = vpop.f32.mrb[0].mxu0
        %v861 = vadd.f32 %v543, %v860
        %v862 = vpop.f32.mrb[0].mxu0
        %v863 = vpop.f32.mrb[0].mxu0
        %v864 = vadd.f32 %v548, %v863
        %v865 = vpop.f32.mrb[0].mxu0
        %866 = vmatprep.mubr.bf16.mxu0 0
        %867 = vmatmul.mubr.bf16.gmra.mrb[0].mxu0 %v756
        %v868 = vpop.f32.mrb[0].mxu0
        %v869 = vadd.f32 %v553, %v868
        %v870 = vpop.f32.mrb[0].mxu0
        %v871 = vpop.f32.mrb[0].mxu0
        %v872 = vadd.f32 %v558, %v871
        %v873 = vpop.f32.mrb[0].mxu0
        %874 = vmatprep.mubr.bf16.mxu0 0
        %875 = vmatmul.mubr.bf16.gmra.mrb[0].mxu0 %v759
        %v876 = vpop.f32.mrb[0].mxu0
        %v877 = vadd.f32 %v563, %v876
        %v878 = vpop.f32.mrb[0].mxu0
        %v879 = vpop.f32.mrb[0].mxu0
        %v880 = vadd.f32 %v568, %v879
        %v881 = vpop.f32.mrb[0].mxu0
        %882 = vmatprep.mubr.bf16.mxu0 0
        %883 = vmatmul.mubr.bf16.gmra.mrb[0].mxu0 %v762
        %v884 = vpop.f32.mrb[0].mxu0
        %v885 = vadd.f32 %v573, %v884
        %v886 = vpop.f32.mrb[0].mxu0
        %v887 = vpop.f32.mrb[0].mxu0
        %v888 = vadd.f32 %v578, %v887
        %v889 = vpop.f32.mrb[0].mxu0
        %890 = vmatprep.mubr.bf16.mxu0 0
        %891 = vmatmul.mubr.bf16.gmra.mrb[0].mxu0 %v765
        %v892 = vpop.f32.mrb[0].mxu0
        %v893 = vadd.f32 %v583, %v892
        %v894 = vpop.f32.mrb[0].mxu0
        %v895 = vpop.f32.mrb[0].mxu0
        %v896 = vadd.f32 %v588, %v895
        %v897 = vpop.f32.mrb[0].mxu0
        %898 = vmatprep.mubr.bf16.mxu0 0
        %899 = vmatmul.mubr.bf16.gmra.mrb[0].mxu0 %v768
        %v900 = vpop.f32.mrb[0].mxu0
        %v901 = vadd.f32 %v593, %v900
        %v902 = vpop.f32.mrb[0].mxu0
        %v903 = vpop.f32.mrb[0].mxu0
        %v904 = vadd.f32 %v598, %v903
        %v905 = vpop.f32.mrb[0].mxu0
        %906 = vmatprep.mubr.bf16.mxu0 0
        %907 = vmatmul.mubr.bf16.gmra.mrb[0].mxu0 %v771
        %v908 = vpop.f32.mrb[0].mxu0
        %v909 = vadd.f32 %v603, %v908
        %v910 = vpop.f32.mrb[0].mxu0
        %v911 = vpop.f32.mrb[0].mxu0
        %v912 = vadd.f32 %v608, %v911
        %v913 = vpop.f32.mrb[0].mxu0
        %914 = vmatprep.mubr.bf16.mxu0 0
        %915 = vmatmul.mubr.bf16.gmra.mrb[0].mxu0 %v774
        %v916 = vpop.f32.mrb[0].mxu0
        %v917 = vadd.f32 %v613, %v916
        %v918 = vpop.f32.mrb[0].mxu0
        %v919 = vpop.f32.mrb[0].mxu0
        %v920 = vadd.f32 %v618, %v919
        %v921 = vpop.f32.mrb[0].mxu0
        %922 = vmatprep.mubr.bf16.mxu0 0
        %923 = vmatmul.mubr.bf16.gmra.mrb[0].mxu0 %v777
        %v924 = vpop.f32.mrb[0].mxu0
        %v925 = vadd.f32 %v623, %v924
        %v926 = vpop.f32.mrb[0].mxu0
        %v927 = vpop.f32.mrb[0].mxu0
        %v928 = vadd.f32 %v628, %v927
        %v929 = vpop.f32.mrb[0].mxu0
        %930 = vmatprep.mubr.bf16.mxu0 0
        %931 = vmatmul.mubr.bf16.gmra.mrb[0].mxu0 %v780
        %v932 = vpop.f32.mrb[0].mxu0
        %v933 = vadd.f32 %v633, %v932
        %v934 = vpop.f32.mrb[0].mxu0
        %v935 = vpop.f32.mrb[0].mxu0
        %v936 = vadd.f32 %v638, %v935
        %v937 = vpop.f32.mrb[0].mxu0
        %938 = vdwg.mxu0
        %v939 = vmax.f32 %v821, 0.0
        %v940 = vmax.f32 %v824, 0.0
        %v941 = vmax.f32 %v829, 0.0
        %v942 = vmax.f32 %v832, 0.0
        %v943 = vmax.f32 %v837, 0.0
        %v944 = vmax.f32 %v840, 0.0
        %v945 = vmax.f32 %v845, 0.0
        %v946 = vmax.f32 %v848, 0.0
        %v947 = vmax.f32 %v853, 0.0
        %v948 = vmax.f32 %v856, 0.0
        %v949 = vmax.f32 %v861, 0.0
        %v950 = vmax.f32 %v864, 0.0
        %v951 = vmax.f32 %v869, 0.0
        %v952 = vmax.f32 %v872, 0.0
        %v953 = vmax.f32 %v877, 0.0
        %v954 = vmax.f32 %v880, 0.0
        %v955 = vmax.f32 %v885, 0.0
        %v956 = vmax.f32 %v888, 0.0
        %v957 = vmax.f32 %v893, 0.0
        %v958 = vmax.f32 %v896, 0.0
        %v959 = vmax.f32 %v901, 0.0
        %v960 = vmax.f32 %v904, 0.0
        %v961 = vmax.f32 %v909, 0.0
        %v962 = vmax.f32 %v912, 0.0
        %v963 = vmax.f32 %v917, 0.0
        %v964 = vmax.f32 %v920, 0.0
        %v965 = vmax.f32 %v925, 0.0
        %v966 = vmax.f32 %v928, 0.0
        %v967 = vmax.f32 %v933, 0.0
        %v968 = vmax.f32 %v936, 0.0
        %v969 = vpack.c.bf16 %v940, %v939
        %v970 = vpack.c.bf16 %v942, %v941
        %v971 = vpack.c.bf16 %v944, %v943
        %v972 = vpack.c.bf16 %v946, %v945
        %v973 = vpack.c.bf16 %v948, %v947
        %v974 = vpack.c.bf16 %v950, %v949
        %v975 = vpack.c.bf16 %v952, %v951
        %v976 = vpack.c.bf16 %v954, %v953
        %v977 = vpack.c.bf16 %v956, %v955
        %v978 = vpack.c.bf16 %v958, %v957
        %v979 = vpack.c.bf16 %v960, %v959
        %v980 = vpack.c.bf16 %v962, %v961
        %v981 = vpack.c.bf16 %v964, %v963
        %v982 = vpack.c.bf16 %v966, %v965
        %v983 = vpack.c.bf16 %v968, %v967
        %v984 = vld [vmem:[%s2] sm:$0xff]
        %v985 = vld [vmem:[%s2 + $0x8] sm:$0xff]
        %v986 = vld [vmem:[%s2 + $0x10] sm:$0xff]
        %v987 = vld [vmem:[%s2 + $0x18] sm:$0xff]
        %v988 = vld [vmem:[%s2 + $0x20] sm:$0xff]
        %v989 = vld [vmem:[%s2 + $0x28] sm:$0xff]
        %v990 = vld [vmem:[%s2 + $0x30] sm:$0xff]
        %v991 = vld [vmem:[%s2 + $0x38] sm:$0xff]
        %v992 = vld [vmem:[%s2 + $0x40] sm:$0xff]
        %v993 = vld [vmem:[%s2 + $0x48] sm:$0xff]
        %v994 = vld [vmem:[%s2 + $0x50] sm:$0xff]
        %v995 = vld [vmem:[%s2 + $0x58] sm:$0xff]
        %v996 = vld [vmem:[%s2 + $0x60] sm:$0xff]
        %v997 = vld [vmem:[%s2 + $0x68] sm:$0xff]
        %v998 = vld [vmem:[%s2 + $0x70] sm:$0xff]
        %v999 = vld [vmem:[%s9] sm:$0xff]
        %v1000 = vld [vmem:[%s9 + $0x8] sm:$0xff]
        %v1001 = vld [vmem:[%s9 + $0x10] sm:$0xff]
        %v1002 = vld [vmem:[%s9 + $0x18] sm:$0xff]
        %v1003 = vld [vmem:[%s9 + $0x20] sm:$0xff]
        %v1004 = vld [vmem:[%s9 + $0x28] sm:$0xff]
        %v1005 = vld [vmem:[%s9 + $0x30] sm:$0xff]
        %v1006 = vld [vmem:[%s9 + $0x38] sm:$0xff]
        %v1007 = vld [vmem:[%s9 + $0x40] sm:$0xff]
        %v1008 = vld [vmem:[%s9 + $0x48] sm:$0xff]
        %v1009 = vld [vmem:[%s9 + $0x50] sm:$0xff]
        %v1010 = vld [vmem:[%s9 + $0x58] sm:$0xff]
        %v1011 = vld [vmem:[%s9 + $0x60] sm:$0xff]
        %v1012 = vld [vmem:[%s9 + $0x68] sm:$0xff]
        %v1013 = vld [vmem:[%s9 + $0x70] sm:$0xff]
        %1015 = vset.pattern.permute.xlu0 1
        %1016 = vperm.xlu0 %1015, %v999
        %v1017 = vpop.permute.xlu0 %1016
        %1020 = vset.pattern.permute.xlu0 1
        %1021 = vperm.xlu0 %1020, %v1000
        %v1022 = vpop.permute.xlu0 %1021
        %1025 = vset.pattern.permute.xlu0 1
        %1026 = vperm.xlu0 %1025, %v1001
        %v1027 = vpop.permute.xlu0 %1026
        %1030 = vset.pattern.permute.xlu0 1
        %1031 = vperm.xlu0 %1030, %v1002
        %v1032 = vpop.permute.xlu0 %1031
        %1035 = vset.pattern.permute.xlu0 1
        %1036 = vperm.xlu0 %1035, %v1003
        %v1037 = vpop.permute.xlu0 %1036
        %1040 = vset.pattern.permute.xlu0 1
        %1041 = vperm.xlu0 %1040, %v1004
        %v1042 = vpop.permute.xlu0 %1041
        %1045 = vset.pattern.permute.xlu0 1
        %1046 = vperm.xlu0 %1045, %v1005
        %v1047 = vpop.permute.xlu0 %1046
        %1050 = vset.pattern.permute.xlu0 1
        %1051 = vperm.xlu0 %1050, %v1006
        %v1052 = vpop.permute.xlu0 %1051
        %1055 = vset.pattern.permute.xlu0 1
        %1056 = vperm.xlu0 %1055, %v1007
        %v1057 = vpop.permute.xlu0 %1056
        %1060 = vset.pattern.permute.xlu0 1
        %1061 = vperm.xlu0 %1060, %v1008
        %v1062 = vpop.permute.xlu0 %1061
        %1065 = vset.pattern.permute.xlu0 1
        %1066 = vperm.xlu0 %1065, %v1009
        %v1067 = vpop.permute.xlu0 %1066
        %1070 = vset.pattern.permute.xlu0 1
        %1071 = vperm.xlu0 %1070, %v1010
        %v1072 = vpop.permute.xlu0 %1071
        %1075 = vset.pattern.permute.xlu0 1
        %1076 = vperm.xlu0 %1075, %v1011
        %v1077 = vpop.permute.xlu0 %1076
        %1080 = vset.pattern.permute.xlu0 1
        %1081 = vperm.xlu0 %1080, %v1012
        %v1082 = vpop.permute.xlu0 %1081
        %1085 = vset.pattern.permute.xlu0 1
        %1086 = vperm.xlu0 %1085, %v1013
        %v1087 = vpop.permute.xlu0 %1086
        %v1104 = vunpack.c.l.b16 %v984
        %v1105 = vunpack.c.h.b16 %v984
        %v1106 = vunpack.c.l.b16 %v985
        %v1107 = vunpack.c.h.b16 %v985
        %v1108 = vunpack.c.l.b16 %v986
        %v1109 = vunpack.c.h.b16 %v986
        %v1110 = vunpack.c.l.b16 %v987
        %v1111 = vunpack.c.h.b16 %v987
        %v1112 = vunpack.c.l.b16 %v988
        %v1113 = vunpack.c.h.b16 %v988
        %v1114 = vunpack.c.l.b16 %v989
        %v1115 = vunpack.c.h.b16 %v989
        %v1116 = vunpack.c.l.b16 %v990
        %v1117 = vunpack.c.h.b16 %v990
        %v1118 = vunpack.c.l.b16 %v991
        %v1119 = vunpack.c.h.b16 %v991
        %v1120 = vunpack.c.l.b16 %v992
        %v1121 = vunpack.c.h.b16 %v992
        %v1122 = vunpack.c.l.b16 %v993
        %v1123 = vunpack.c.h.b16 %v993
        %v1124 = vunpack.c.l.b16 %v994
        %v1125 = vunpack.c.h.b16 %v994
        %v1126 = vunpack.c.l.b16 %v995
        %v1127 = vunpack.c.h.b16 %v995
        %v1128 = vunpack.c.l.b16 %v996
        %v1129 = vunpack.c.h.b16 %v996
        %v1130 = vunpack.c.l.b16 %v997
        %v1131 = vunpack.c.h.b16 %v997
        %v1132 = vunpack.c.l.b16 %v998
        %v1133 = vunpack.c.h.b16 %v998
        %v1134 = vpack.c.b16 %v1106, %v1104
        %v1135 = vpack.c.b16 %v1107, %v1105
        %v1136 = vpack.c.b16 %v1110, %v1108
        %v1137 = vpack.c.b16 %v1111, %v1109
        %v1138 = vpack.c.b16 %v1114, %v1112
        %v1139 = vpack.c.b16 %v1115, %v1113
        %v1140 = vpack.c.b16 %v1118, %v1116
        %v1141 = vpack.c.b16 %v1119, %v1117
        %v1142 = vpack.c.b16 %v1122, %v1120
        %v1143 = vpack.c.b16 %v1123, %v1121
        %v1144 = vpack.c.b16 %v1126, %v1124
        %v1145 = vpack.c.b16 %v1127, %v1125
        %v1146 = vpack.c.b16 %v1130, %v1128
        %v1147 = vpack.c.b16 %v1131, %v1129
        %v1148 = vpack.c.b16 %v1132, %v1132
        %v1149 = vpack.c.b16 %v1133, %v1133
        %vm1158 = vcmask 916480
        %v1160 = vsel %vm1158, %v1135, 0
        %v1163 = vsel %vm1158, %v1137, 0
        %v1166 = vsel %vm1158, %v1139, 0
        %v1169 = vsel %vm1158, %v1141, 0
        %v1172 = vsel %vm1158, %v1143, 0
        %v1175 = vsel %vm1158, %v1145, 0
        %v1178 = vsel %vm1158, %v1147, 0
        %v1181 = vsel %vm1158, %v1149, 0
        %1183 = vmatprep.subr.bf16.mxu0 0
        %1184 = vmatpush1.bf16.msra.mxu0 %v969
        %1185 = vmatprep.subr.bf16.mxu0 0
        %1186 = vmatpush1.bf16.msra.mxu0 %v970
        %1187 = vmatprep.subr.bf16.mxu0 0
        %1188 = vmatpush1.bf16.msra.mxu0 %v971
        %1189 = vmatprep.subr.bf16.mxu0 0
        %1190 = vmatpush1.bf16.msra.mxu0 %v972
        %1191 = vmatprep.subr.bf16.mxu0 0
        %1192 = vmatpush1.bf16.msra.mxu0 %v973
        %1193 = vmatprep.subr.bf16.mxu0 0
        %1194 = vmatpush1.bf16.msra.mxu0 %v974
        %1195 = vmatprep.subr.bf16.mxu0 0
        %1196 = vmatpush1.bf16.msra.mxu0 %v975
        %1197 = vmatprep.subr.bf16.mxu0 0
        %1198 = vmatpush1.bf16.msra.mxu0 %v976
        %1199 = vmatprep.subr.bf16.mxu0 0
        %1200 = vmatpush1.bf16.msra.mxu0 %v977
        %1201 = vmatprep.subr.bf16.mxu0 0
        %1202 = vmatpush1.bf16.msra.mxu0 %v978
        %1203 = vmatprep.subr.bf16.mxu0 0
        %1204 = vmatpush1.bf16.msra.mxu0 %v979
        %1205 = vmatprep.subr.bf16.mxu0 0
        %1206 = vmatpush1.bf16.msra.mxu0 %v980
        %1207 = vmatprep.subr.bf16.mxu0 0
        %1208 = vmatpush1.bf16.msra.mxu0 %v981
        %1209 = vmatprep.subr.bf16.mxu0 0
        %1210 = vmatpush1.bf16.msra.mxu0 %v982
        %1211 = vmatprep.subr.bf16.mxu0 0
        %1212 = vmatpush1.bf16.msra.mxu0 %v983
        %1213 = vmatprep.subr.bf16.mxu0 0
        %1214 = vmatpush1.bf16.msra.mxu0 0
        %1215 = vmatprep.mubr.bf16.mxu0 %v1160
        %1216 = vmatmul.mubr.bf16.gmra.mrb[0].mxu0 %v1134
        %v1217 = vpop.f32.mrb[0].mxu0
        %v1218 = vadd.f32 %v1017, %v1217
        %v1219 = vpop.f32.mrb[0].mxu0
        %v1220 = vpop.f32.mrb[0].mxu0
        %v1221 = vadd.f32 %v1022, %v1220
        %v1222 = vpop.f32.mrb[0].mxu0
        %1223 = vmatprep.mubr.bf16.mxu0 %v1163
        %1224 = vmatmul.mubr.bf16.gmra.mrb[0].mxu0 %v1136
        %v1225 = vpop.f32.mrb[0].mxu0
        %v1226 = vadd.f32 %v1027, %v1225
        %v1227 = vpop.f32.mrb[0].mxu0
        %v1228 = vpop.f32.mrb[0].mxu0
        %v1229 = vadd.f32 %v1032, %v1228
        %v1230 = vpop.f32.mrb[0].mxu0
        %1231 = vmatprep.mubr.bf16.mxu0 %v1166
        %1232 = vmatmul.mubr.bf16.gmra.mrb[0].mxu0 %v1138
        %v1233 = vpop.f32.mrb[0].mxu0
        %v1234 = vadd.f32 %v1037, %v1233
        %v1235 = vpop.f32.mrb[0].mxu0
        %v1236 = vpop.f32.mrb[0].mxu0
        %v1237 = vadd.f32 %v1042, %v1236
        %v1238 = vpop.f32.mrb[0].mxu0
        %1239 = vmatprep.mubr.bf16.mxu0 %v1169
        %1240 = vmatmul.mubr.bf16.gmra.mrb[0].mxu0 %v1140
        %v1241 = vpop.f32.mrb[0].mxu0
        %v1242 = vadd.f32 %v1047, %v1241
        %v1243 = vpop.f32.mrb[0].mxu0
        %v1244 = vpop.f32.mrb[0].mxu0
        %v1245 = vadd.f32 %v1052, %v1244
        %v1246 = vpop.f32.mrb[0].mxu0
        %1247 = vmatprep.mubr.bf16.mxu0 %v1172
        %1248 = vmatmul.mubr.bf16.gmra.mrb[0].mxu0 %v1142
        %v1249 = vpop.f32.mrb[0].mxu0
        %v1250 = vadd.f32 %v1057, %v1249
        %v1251 = vpop.f32.mrb[0].mxu0
        %v1252 = vpop.f32.mrb[0].mxu0
        %v1253 = vadd.f32 %v1062, %v1252
        %v1254 = vpop.f32.mrb[0].mxu0
        %1255 = vmatprep.mubr.bf16.mxu0 %v1175
        %1256 = vmatmul.mubr.bf16.gmra.mrb[0].mxu0 %v1144
        %v1257 = vpop.f32.mrb[0].mxu0
        %v1258 = vadd.f32 %v1067, %v1257
        %v1259 = vpop.f32.mrb[0].mxu0
        %v1260 = vpop.f32.mrb[0].mxu0
        %v1261 = vadd.f32 %v1072, %v1260
        %v1262 = vpop.f32.mrb[0].mxu0
        %1263 = vmatprep.mubr.bf16.mxu0 %v1178
        %1264 = vmatmul.mubr.bf16.gmra.mrb[0].mxu0 %v1146
        %v1265 = vpop.f32.mrb[0].mxu0
        %v1266 = vadd.f32 %v1077, %v1265
        %v1267 = vpop.f32.mrb[0].mxu0
        %v1268 = vpop.f32.mrb[0].mxu0
        %v1269 = vadd.f32 %v1082, %v1268
        %v1270 = vpop.f32.mrb[0].mxu0
        %1271 = vmatprep.mubr.bf16.mxu0 %v1181
        %1272 = vmatmul.mubr.bf16.gmra.mrb[0].mxu0 %v1148
        %v1273 = vpop.f32.mrb[0].mxu0
        %v1274 = vadd.f32 %v1087, %v1273
        %v1275 = vpop.f32.mrb[0].mxu0
        %v1276 = vpop.f32.mrb[0].mxu0
        %v1277 = vpop.f32.mrb[0].mxu0
        %1278 = vdwg.mxu0
        %v1279 = vmax.f32 %v1218, 0.0
        %v1280 = vmax.f32 %v1221, 0.0
        %v1281 = vmax.f32 %v1226, 0.0
        %v1282 = vmax.f32 %v1229, 0.0
        %v1283 = vmax.f32 %v1234, 0.0
        %v1284 = vmax.f32 %v1237, 0.0
        %v1285 = vmax.f32 %v1242, 0.0
        %v1286 = vmax.f32 %v1245, 0.0
        %v1287 = vmax.f32 %v1250, 0.0
        %v1288 = vmax.f32 %v1253, 0.0
        %v1289 = vmax.f32 %v1258, 0.0
        %v1290 = vmax.f32 %v1261, 0.0
        %v1291 = vmax.f32 %v1266, 0.0
        %v1292 = vmax.f32 %v1269, 0.0
        %v1293 = vmax.f32 %v1274, 0.0
        %v1294 = vpack.c.bf16 %v1280, %v1279
        %v1295 = vpack.c.bf16 %v1282, %v1281
        %v1296 = vpack.c.bf16 %v1284, %v1283
        %v1297 = vpack.c.bf16 %v1286, %v1285
        %v1298 = vpack.c.bf16 %v1288, %v1287
        %v1299 = vpack.c.bf16 %v1290, %v1289
        %v1300 = vpack.c.bf16 %v1292, %v1291
        %v1301 = vpack.c.bf16 %v1293, %v1293
        %v1302 = vld [vmem:[%s3] sm:$0xf]
        %v1303 = vld [vmem:[%s3 + $0x4] sm:$0xf]
        %v1304 = vld [vmem:[%s3 + $0x8] sm:$0xf]
        %v1305 = vld [vmem:[%s3 + $0xc] sm:$0x7]
        %v1306 = vld [vmem:[%s9] sm:$0xff]
        %v1307 = vld [vmem:[%s9 + $0x8] sm:$0xff]
        %v1308 = vld [vmem:[%s9 + $0x10] sm:$0xff]
        %v1309 = vld [vmem:[%s9 + $0x18] sm:$0x3f]
        %1311 = vset.pattern.permute.xlu0 2
        %1312 = vperm.xlu0 %1311, %v1306
        %v1313 = vpop.permute.xlu0 %1312
        %1316 = vset.pattern.permute.xlu0 2
        %1317 = vperm.xlu0 %1316, %v1307
        %v1318 = vpop.permute.xlu0 %1317
        %1321 = vset.pattern.permute.xlu0 2
        %1322 = vperm.xlu0 %1321, %v1308
        %v1323 = vpop.permute.xlu0 %1322
        %1326 = vset.pattern.permute.xlu0 2
        %1327 = vperm.xlu0 %1326, %v1309
        %v1328 = vpop.permute.xlu0 %1327
        %v1334 = vunpack.c.l.b16 %v1302
        %v1335 = vunpack.c.l.b16 %v1303
        %v1336 = vunpack.c.l.b16 %v1304
        %v1337 = vunpack.c.l.b16 %v1305
        %v1338 = vpack.c.b16 %v1335, %v1334
        %v1339 = vpack.c.b16 %v1337, %v1336
        %vm1340 = vcmask 982016
        %v1342 = vsel %vm1340, %v1338, 0
        %v1345 = vsel %vm1340, %v1339, 0
        %v1348 = vsel %vm782, %v1301, 0
        %1350 = vmatprep.subr.bf16.mxu0 0
        %1351 = vmatpush1.bf16.msra.mxu0 %v1294
        %1352 = vmatprep.subr.bf16.mxu0 0
        %1353 = vmatpush1.bf16.msra.mxu0 %v1295
        %1354 = vmatprep.subr.bf16.mxu0 0
        %1355 = vmatpush1.bf16.msra.mxu0 %v1296
        %1356 = vmatprep.subr.bf16.mxu0 0
        %1357 = vmatpush1.bf16.msra.mxu0 %v1297
        %1358 = vmatprep.subr.bf16.mxu0 0
        %1359 = vmatpush1.bf16.msra.mxu0 %v1298
        %1360 = vmatprep.subr.bf16.mxu0 0
        %1361 = vmatpush1.bf16.msra.mxu0 %v1299
        %1362 = vmatprep.subr.bf16.mxu0 0
        %1363 = vmatpush1.bf16.msra.mxu0 %v1300
        %1364 = vmatprep.subr.bf16.mxu0 0
        %1365 = vmatpush1.bf16.msra.mxu0 %v1348
        %1366 = vmatprep.subr.bf16.mxu0 0
        %1367 = vmatpush1.bf16.msra.mxu0 0
        %1368 = vmatprep.subr.bf16.mxu0 0
        %1369 = vmatpush1.bf16.msra.mxu0 0
        %1370 = vmatprep.subr.bf16.mxu0 0
        %1371 = vmatpush1.bf16.msra.mxu0 0
        %1372 = vmatprep.subr.bf16.mxu0 0
        %1373 = vmatpush1.bf16.msra.mxu0 0
        %1374 = vmatprep.subr.bf16.mxu0 0
        %1375 = vmatpush1.bf16.msra.mxu0 0
        %1376 = vmatprep.subr.bf16.mxu0 0
        %1377 = vmatpush1.bf16.msra.mxu0 0
        %1378 = vmatprep.subr.bf16.mxu0 0
        %1379 = vmatpush1.bf16.msra.mxu0 0
        %1380 = vmatprep.subr.bf16.mxu0 0
        %1381 = vmatpush1.bf16.msra.mxu0 0
        %1382 = vmatprep.mubr.bf16.mxu0 0
        %1383 = vmatmul.mubr.bf16.gmra.mrb[0].mxu0 %v1342
        %v1384 = vpop.f32.mrb[0].mxu0
        %v1385 = vadd.f32 %v1313, %v1384
        %v1386 = vpop.f32.mrb[0].mxu0
        %v1387 = vpop.f32.mrb[0].mxu0
        %v1388 = vadd.f32 %v1318, %v1387
        %v1389 = vpop.f32.mrb[0].mxu0
        %1390 = vmatprep.mubr.bf16.mxu0 0
        %1391 = vmatmul.mubr.bf16.gmra.mrb[0].mxu0 %v1345
        %v1392 = vpop.f32.mrb[0].mxu0
        %v1393 = vadd.f32 %v1323, %v1392
        %v1394 = vpop.f32.mrb[0].mxu0
        %v1395 = vpop.f32.mrb[0].mxu0
        %v1396 = vadd.f32 %v1328, %v1395
        %v1397 = vpop.f32.mrb[0].mxu0
        %1398 = vdwg.mxu0
        %v1399 = vmax.f32 %v1385, 0.0
        %v1400 = vmax.f32 %v1388, 0.0
        %v1401 = vmax.f32 %v1393, 0.0
        %v1402 = vmax.f32 %v1396, 0.0
        %v1403 = vpack.c.bf16 %v1400, %v1399
        %v1404 = vpack.c.bf16 %v1402, %v1401
        %v1405 = vld [vmem:[%s4] sm:$0xf]
        %v1406 = vld [vmem:[%s4 + $0x4] sm:$0xf]
        %v1407 = vld [vmem:[%s9] sm:$0xff]
        %v1408 = vld [vmem:[%s9 + $0x8] sm:$0x7f]
        %1410 = vset.pattern.permute.xlu0 3
        %1411 = vperm.xlu0 %1410, %v1407
        %v1412 = vpop.permute.xlu0 %1411
        %1415 = vset.pattern.permute.xlu0 3
        %1416 = vperm.xlu0 %1415, %v1408
        %v1417 = vpop.permute.xlu0 %1416
        %v1421 = vunpack.c.l.b16 %v1405
        %v1422 = vunpack.c.l.b16 %v1406
        %v1423 = vpack.c.b16 %v1422, %v1421
        %vm1424 = vcmask 244736
        %v1426 = vsel %vm1424, %v1423, 0
        %vm1428 = vcmask 1046528
        %v1430 = vsel %vm1428, %v1404, 0
        %1432 = vmatprep.subr.bf16.mxu0 0
        %1433 = vmatpush1.bf16.msra.mxu0 %v1403
        %1434 = vmatprep.subr.bf16.mxu0 0
        %1435 = vmatpush1.bf16.msra.mxu0 %v1430
        %1436 = vmatprep.subr.bf16.mxu0 0
        %1437 = vmatpush1.bf16.msra.mxu0 0
        %1438 = vmatprep.subr.bf16.mxu0 0
        %1439 = vmatpush1.bf16.msra.mxu0 0
        %1440 = vmatprep.subr.bf16.mxu0 0
        %1441 = vmatpush1.bf16.msra.mxu0 0
        %1442 = vmatprep.subr.bf16.mxu0 0
        %1443 = vmatpush1.bf16.msra.mxu0 0
        %1444 = vmatprep.subr.bf16.mxu0 0
        %1445 = vmatpush1.bf16.msra.mxu0 0
        %1446 = vmatprep.subr.bf16.mxu0 0
        %1447 = vmatpush1.bf16.msra.mxu0 0
        %1448 = vmatprep.subr.bf16.mxu0 0
        %1449 = vmatpush1.bf16.msra.mxu0 0
        %1450 = vmatprep.subr.bf16.mxu0 0
        %1451 = vmatpush1.bf16.msra.mxu0 0
        %1452 = vmatprep.subr.bf16.mxu0 0
        %1453 = vmatpush1.bf16.msra.mxu0 0
        %1454 = vmatprep.subr.bf16.mxu0 0
        %1455 = vmatpush1.bf16.msra.mxu0 0
        %1456 = vmatprep.subr.bf16.mxu0 0
        %1457 = vmatpush1.bf16.msra.mxu0 0
        %1458 = vmatprep.subr.bf16.mxu0 0
        %1459 = vmatpush1.bf16.msra.mxu0 0
        %1460 = vmatprep.subr.bf16.mxu0 0
        %1461 = vmatpush1.bf16.msra.mxu0 0
        %1462 = vmatprep.subr.bf16.mxu0 0
        %1463 = vmatpush1.bf16.msra.mxu0 0
        %1464 = vmatprep.mubr.bf16.mxu0 0
        %1465 = vmatmul.mubr.bf16.gmra.mrb[0].mxu0 %v1426
        %v1466 = vpop.f32.mrb[0].mxu0
        %v1467 = vadd.f32 %v1412, %v1466
        %v1468 = vpop.f32.mrb[0].mxu0
        %v1469 = vpop.f32.mrb[0].mxu0
        %v1470 = vadd.f32 %v1417, %v1469
        %v1471 = vpop.f32.mrb[0].mxu0
        %1472 = vdwg.mxu0
        %v1473 = vpack.c.bf16 %v1470, %v1467
        %v1474 = vld [vmem:[%s5] sm:$0xf]
        %v1475 = vld [vmem:[%s5 + $0x4] sm:$0xf]
        %1476 = vset.pattern.permute.xlu0 4
        %1477 = vperm.xlu0 %1476, %v1407
        %v1478 = vpop.permute.xlu0 %1477
        %1480 = vset.pattern.permute.xlu0 4
        %1481 = vperm.xlu0 %1480, %v1408
        %v1482 = vpop.permute.xlu0 %1481
        %v1486 = vunpack.c.l.b16 %v1474
        %v1487 = vunpack.c.l.b16 %v1475
        %v1488 = vpack.c.b16 %v1487, %v1486
        %vm1489 = vcmask 121856
        %v1491 = vsel %vm1489, %v1488, 0
        %vm1493 = vcmask 1047552
        %v1494 = vsel %vm1428, 4294967295, 65535
        %v1495 = vsel %vm1493, %v1494, 0
        %v1497 = vand.u32 %v1473, %v1495
        %1499 = vmatprep.subr.bf16.mxu0 0
        %1500 = vmatpush1.bf16.msra.mxu0 %v1497
        %1501 = vmatprep.subr.bf16.mxu0 0
        %1502 = vmatpush1.bf16.msra.mxu0 0
        %1503 = vmatprep.subr.bf16.mxu0 0
        %1504 = vmatpush1.bf16.msra.mxu0 0
        %1505 = vmatprep.subr.bf16.mxu0 0
        %1506 = vmatpush1.bf16.msra.mxu0 0
        %1507 = vmatprep.subr.bf16.mxu0 0
        %1508 = vmatpush1.bf16.msra.mxu0 0
        %1509 = vmatprep.subr.bf16.mxu0 0
        %1510 = vmatpush1.bf16.msra.mxu0 0
        %1511 = vmatprep.subr.bf16.mxu0 0
        %1512 = vmatpush1.bf16.msra.mxu0 0
        %1513 = vmatprep.subr.bf16.mxu0 0
        %1514 = vmatpush1.bf16.msra.mxu0 0
        %1515 = vmatprep.subr.bf16.mxu0 0
        %1516 = vmatpush1.bf16.msra.mxu0 0
        %1517 = vmatprep.subr.bf16.mxu0 0
        %1518 = vmatpush1.bf16.msra.mxu0 0
        %1519 = vmatprep.subr.bf16.mxu0 0
        %1520 = vmatpush1.bf16.msra.mxu0 0
        %1521 = vmatprep.subr.bf16.mxu0 0
        %1522 = vmatpush1.bf16.msra.mxu0 0
        %1523 = vmatprep.subr.bf16.mxu0 0
        %1524 = vmatpush1.bf16.msra.mxu0 0
        %1525 = vmatprep.subr.bf16.mxu0 0
        %1526 = vmatpush1.bf16.msra.mxu0 0
        %1527 = vmatprep.subr.bf16.mxu0 0
        %1528 = vmatpush1.bf16.msra.mxu0 0
        %1529 = vmatprep.subr.bf16.mxu0 0
        %1530 = vmatpush1.bf16.msra.mxu0 0
        %1531 = vmatprep.mubr.bf16.mxu0 0
        %1532 = vmatmul.mubr.bf16.gmra.mrb[0].mxu0 %v1491
        %v1533 = vpop.f32.mrb[0].mxu0
        %v1534 = vadd.f32 %v1478, %v1533
        %v1535 = vpop.f32.mrb[0].mxu0
        %v1536 = vpop.f32.mrb[0].mxu0
        %v1537 = vadd.f32 %v1482, %v1536
        %v1538 = vpop.f32.mrb[0].mxu0
        %1539 = vdwg.mxu0
        %v1540 = vmax.f32 %v1534, 0.0
        %v1541 = vmax.f32 %v1537, 0.0
        %v1542 = vpack.c.bf16 %v1541, %v1540
        %v1543 = vld [vmem:[%s6] sm:$0xf]
        %v1544 = vld [vmem:[%s6 + $0x4] sm:$0x1]
        %v1545 = vld [vmem:[%s9] sm:$0xff]
        %v1546 = vld [vmem:[%s9 + $0x8] sm:$0x3]
        %1548 = vset.pattern.permute.xlu0 5
        %1549 = vperm.xlu0 %1548, %v1545
        %v1550 = vpop.permute.xlu0 %1549
        %1553 = vset.pattern.permute.xlu0 5
        %1554 = vperm.xlu0 %1553, %v1546
        %v1555 = vpop.permute.xlu0 %1554
        %v1559 = vunpack.c.l.b16 %v1543
        %v1560 = vunpack.c.l.b16 %v1544
        %v1561 = vpack.c.b16 %v1560, %v1559
        %v1563 = vsel %vm1489, %v1561, 0
        %v1566 = vand.u32 %v1542, %v1495
        %1568 = vmatprep.subr.bf16.mxu0 0
        %1569 = vmatpush1.bf16.msra.mxu0 %v1566
        %1570 = vmatprep.subr.bf16.mxu0 0
        %1571 = vmatpush1.bf16.msra.mxu0 0
        %1572 = vmatprep.subr.bf16.mxu0 0
        %1573 = vmatpush1.bf16.msra.mxu0 0
        %1574 = vmatprep.subr.bf16.mxu0 0
        %1575 = vmatpush1.bf16.msra.mxu0 0
        %1576 = vmatprep.subr.bf16.mxu0 0
        %1577 = vmatpush1.bf16.msra.mxu0 0
        %1578 = vmatprep.subr.bf16.mxu0 0
        %1579 = vmatpush1.bf16.msra.mxu0 0
        %1580 = vmatprep.subr.bf16.mxu0 0
        %1581 = vmatpush1.bf16.msra.mxu0 0
        %1582 = vmatprep.subr.bf16.mxu0 0
        %1583 = vmatpush1.bf16.msra.mxu0 0
        %1584 = vmatprep.subr.bf16.mxu0 0
        %1585 = vmatpush1.bf16.msra.mxu0 0
        %1586 = vmatprep.subr.bf16.mxu0 0
        %1587 = vmatpush1.bf16.msra.mxu0 0
        %1588 = vmatprep.subr.bf16.mxu0 0
        %1589 = vmatpush1.bf16.msra.mxu0 0
        %1590 = vmatprep.subr.bf16.mxu0 0
        %1591 = vmatpush1.bf16.msra.mxu0 0
        %1592 = vmatprep.subr.bf16.mxu0 0
        %1593 = vmatpush1.bf16.msra.mxu0 0
        %1594 = vmatprep.subr.bf16.mxu0 0
        %1595 = vmatpush1.bf16.msra.mxu0 0
        %1596 = vmatprep.subr.bf16.mxu0 0
        %1597 = vmatpush1.bf16.msra.mxu0 0
        %1598 = vmatprep.subr.bf16.mxu0 0
        %1599 = vmatpush1.bf16.msra.mxu0 0
        %1600 = vmatprep.mubr.bf16.mxu0 0
        %1601 = vmatmul.mubr.bf16.gmra.mrb[0].mxu0 %v1563
        %v1602 = vpop.f32.mrb[0].mxu0
        %v1603 = vadd.f32 %v1550, %v1602
        %v1604 = vpop.f32.mrb[0].mxu0
        %v1605 = vpop.f32.mrb[0].mxu0
        %v1606 = vadd.f32 %v1555, %v1605
        %v1607 = vpop.f32.mrb[0].mxu0
        %1608 = vdwg.mxu0
        %v1609 = vmax.f32 %v1603, 0.0
        %v1610 = vmax.f32 %v1606, 0.0
        %v1611 = vpack.c.bf16 %v1610, %v1609
        %v1612 = vld [vmem:[%s7] sm:$0x7]
        %v1613 = vld [vmem:[%s9] sm:$0x1f]
        %1615 = vset.pattern.permute.xlu0 6
        %1616 = vperm.xlu0 %1615, %v1613
        %v1617 = vpop.permute.xlu0 %1616
        %vm1619 = vcmask 80896
        %v1621 = vsel %vm1619, %v1612, 0
        %vm1623 = vcmask 1044480
        %v1625 = vsel %vm1623, %v1611, 0
        %1627 = vmatprep.subr.bf16.mxu0 0
        %1628 = vmatpush1.bf16.msra.mxu0 %v1625
        %1629 = vmatprep.subr.bf16.mxu0 0
        %1630 = vmatpush1.bf16.msra.mxu0 0
        %1631 = vmatprep.subr.bf16.mxu0 0
        %1632 = vmatpush1.bf16.msra.mxu0 0
        %1633 = vmatprep.subr.bf16.mxu0 0
        %1634 = vmatpush1.bf16.msra.mxu0 0
        %1635 = vmatprep.subr.bf16.mxu0 0
        %1636 = vmatpush1.bf16.msra.mxu0 0
        %1637 = vmatprep.subr.bf16.mxu0 0
        %1638 = vmatpush1.bf16.msra.mxu0 0
        %1639 = vmatprep.subr.bf16.mxu0 0
        %1640 = vmatpush1.bf16.msra.mxu0 0
        %1641 = vmatprep.subr.bf16.mxu0 0
        %1642 = vmatpush1.bf16.msra.mxu0 0
        %1643 = vmatprep.subr.bf16.mxu0 0
        %1644 = vmatpush1.bf16.msra.mxu0 0
        %1645 = vmatprep.subr.bf16.mxu0 0
        %1646 = vmatpush1.bf16.msra.mxu0 0
        %1647 = vmatprep.subr.bf16.mxu0 0
        %1648 = vmatpush1.bf16.msra.mxu0 0
        %1649 = vmatprep.subr.bf16.mxu0 0
        %1650 = vmatpush1.bf16.msra.mxu0 0
        %1651 = vmatprep.subr.bf16.mxu0 0
        %1652 = vmatpush1.bf16.msra.mxu0 0
        %1653 = vmatprep.subr.bf16.mxu0 0
        %1654 = vmatpush1.bf16.msra.mxu0 0
        %1655 = vmatprep.subr.bf16.mxu0 0
        %1656 = vmatpush1.bf16.msra.mxu0 0
        %1657 = vmatprep.subr.bf16.mxu0 0
        %1658 = vmatpush1.bf16.msra.mxu0 0
        %1659 = vmatprep.mubr.bf16.mxu0 0
        %1660 = vmatmul.mubr.bf16.gmra.mrb[0].mxu0 %v1621
        %v1661 = vpop.f32.mrb[0].mxu0
        %v1662 = vadd.f32 %v1617, %v1661
        %v1663 = vpop.f32.mrb[0].mxu0
        %v1664 = vpop.f32.mrb[0].mxu0
        %v1665 = vpop.f32.mrb[0].mxu0
        %1666 = vdwg.mxu0
        %v1667 = vmax.f32 %v1662, 0.0
        %v1668 = vpack.c.bf16 %v1667, %v1667
        %v1669 = vld [vmem:[%s8] sm:$0x1]
        %v1670 = vld [vmem:[%s9] sm:$0x1]
        %1672 = vset.pattern.permute.xlu0 7
        %1673 = vperm.xlu0 %1672, %v1670
        %v1674 = vpop.permute.xlu0 %1673
        %vm1676 = vcmask 39936
        %v1678 = vsel %vm1676, %v1669, 0
        %vm1680 = vcmask 1041408
        %vm1681 = vcmask 1042432
        %v1682 = vsel %vm1680, 4294967295, 65535
        %v1683 = vsel %vm1681, %v1682, 0
        %v1685 = vand.u32 %v1668, %v1683
        %1687 = vmatprep.subr.bf16.mxu0 0
        %1688 = vmatpush1.bf16.msra.mxu0 %v1685
        %1689 = vmatprep.subr.bf16.mxu0 0
        %1690 = vmatpush1.bf16.msra.mxu0 0
        %1691 = vmatprep.subr.bf16.mxu0 0
        %1692 = vmatpush1.bf16.msra.mxu0 0
        %1693 = vmatprep.subr.bf16.mxu0 0
        %1694 = vmatpush1.bf16.msra.mxu0 0
        %1695 = vmatprep.subr.bf16.mxu0 0
        %1696 = vmatpush1.bf16.msra.mxu0 0
        %1697 = vmatprep.subr.bf16.mxu0 0
        %1698 = vmatpush1.bf16.msra.mxu0 0
        %1699 = vmatprep.subr.bf16.mxu0 0
        %1700 = vmatpush1.bf16.msra.mxu0 0
        %1701 = vmatprep.subr.bf16.mxu0 0
        %1702 = vmatpush1.bf16.msra.mxu0 0
        %1703 = vmatprep.subr.bf16.mxu0 0
        %1704 = vmatpush1.bf16.msra.mxu0 0
        %1705 = vmatprep.subr.bf16.mxu0 0
        %1706 = vmatpush1.bf16.msra.mxu0 0
        %1707 = vmatprep.subr.bf16.mxu0 0
        %1708 = vmatpush1.bf16.msra.mxu0 0
        %1709 = vmatprep.subr.bf16.mxu0 0
        %1710 = vmatpush1.bf16.msra.mxu0 0
        %1711 = vmatprep.subr.bf16.mxu0 0
        %1712 = vmatpush1.bf16.msra.mxu0 0
        %1713 = vmatprep.subr.bf16.mxu0 0
        %1714 = vmatpush1.bf16.msra.mxu0 0
        %1715 = vmatprep.subr.bf16.mxu0 0
        %1716 = vmatpush1.bf16.msra.mxu0 0
        %1717 = vmatprep.subr.bf16.mxu0 0
        %1718 = vmatpush1.bf16.msra.mxu0 0
        %1719 = vmatprep.mubr.bf16.mxu0 0
        %1720 = vmatmul.mubr.bf16.gmra.mrb[0].mxu0 %v1678
        %v1721 = vpop.f32.mrb[0].mxu0
        %v1722 = vadd.f32 %v1674, %v1721
        %v1723 = vpop.f32.mrb[0].mxu0
        %v1724 = vpop.f32.mrb[0].mxu0
        %v1725 = vpop.f32.mrb[0].mxu0
        %1726 = vdwg.mxu0
        %v1727 = vsub.f32 0.0, %v1722
        %v1728 = vmul.f32 %v1727, 1.442695
        %v1729 = vpow.pop %v1728
        %v1730 = vadd.f32 %v1729, 1.0
        %v1731 = vrcp.pop %v1730
        %v1732 = vmul.f32 1.0, %v1731
        %1733 = vst [vmem:[%s421] sm:$0x1] %v1732
        %s1734 = sand.u32 %s247, 1
        %s1735 = scalar_lea.sflag [#allocation4], %s1734
        %s1736 = sand.u32 %s247, 1
        %s1737 = scalar_lea.vmem [#allocation3], %s1736
        // Predicated region
        $region102: #{tpu_custom_call.1} parent=96 // pred_check
          %p1738 = pneg %p257
        $region103: #{tpu_custom_call.1} parent=96 // pred_check_branch
          %1740 = sbr.rel (%p1738) target = $region105
        $region104: #{tpu_custom_call.1} parent=96 // pred_region
          %s1742 = ssub.s32 16, 16
          %1743 = vsyncadd %s1735, %s1742
          %s1744 = smul.addr %s24, 16
          %s1745 = scalar_lea.hbm %s10, %s1744
          %s1747 = sshll.u32 %s1737, 4
          %s1748 = int_to_ptr.vmem [resolvable:$true] %s1747
          %1750 = dma.vmem_to_hbm [thread:$0]  %s1748, 16, %s1745, %s1735
        $region105: #{tpu_custom_call.1} parent=96 // pred_fallthru
          _
      $region97: #{tpu_custom_call.1} parent=5 // pred_fallthru
        _
      %p1751 = scmp.le.s32.totalorder 2, %s19
      // Predicated region
      $region106: #{tpu_custom_call.1} parent=5 // pred_check
        %p1752 = pneg %p1751
      $region107: #{tpu_custom_call.1} parent=5 // pred_check_branch
        %1754 = sbr.rel (%p1752) target = $region109
      $region108: #{tpu_custom_call.1} parent=5 // pred_region
        %s1755 = ssub.s32 %s19, 2
        // Predicated region
        $region110: #{tpu_custom_call.1} parent=108 // pred_check
          %p1756 = pneg %p263
        $region111: #{tpu_custom_call.1} parent=108 // pred_check_branch
          %1758 = sbr.rel (%p1756) target = $region113
        $region112: #{tpu_custom_call.1} parent=108 // pred_region
          %s1759 = sand.u32 %s248, 1
          %s1760 = scalar_lea.sflag [#allocation4], %s1759
          %s1761 = sand.u32 %s248, 1
          %s1762 = scalar_lea.vmem [#allocation3], %s1761
          %1763 = dma.done %s1760, 16
        $region113: #{tpu_custom_call.1} parent=108 // pred_fallthru
          _
      $region109: #{tpu_custom_call.1} parent=5 // pred_fallthru
        _
    $region6: #{tpu_custom_call.1} parent=1 // loop_footer
      %s23 = sadd.s32 1, %s19
    $region7: #{tpu_custom_call.1} parent=1 // loop_footer_branch
      %18 = sbr.rel target = $region3
    $region8: #{tpu_custom_call.1} parent=1 // loop_exit
      _
    %1764 = vsyncpa [#allocation4], 1
    %s1765 = scalar_lea.sflag [#allocation4], 1
    %1766 = vsyncpa %s1765, 1

</llo_original>
